<compile_context>
chip_gen: v7x
topology: tpu7x:2x2x1
jax: 0.10.0
libtpu: 0.0.40
codegen_flags: <defaults>
</compile_context>

<pallas_src>
import functools

import jax
import jax.numpy as jnp
from jax.experimental import pallas as pl
from jax.experimental.pallas import tpu as pltpu

NEG_SLOPE = 0.01   # nn.LeakyReLU default negative_slope
BN_EPS = 1e-5      # nn.BatchNorm1d default eps
EXPANSION = 4      # Bottleneck.expansion
LANE = 128         # TPU lane width; channel dims padded to multiples of this
SUB = 8            # TPU sublane width


def _round_up(x, m):
    return ((x + m - 1) // m) * m


def _leaky(x):
    return jnp.where(x >= 0, x, x * NEG_SLOPE)


# --------------------------------------------------------------------------
# Fused whole-network kernel (one invocation per batch element)
# --------------------------------------------------------------------------
def _fused_resnet_kernel(*refs, cfgs, inv_lfin):
    """refs = (x_stem, stem_w, stem_shift,
               [w1, s1, w2cat, s2, w3, s3, (wd, sd)] per block,
               fc_w, fc_b,            # inputs
               out,                   # output
               buf)                   # VMEM scratch (halo / strided reads)
    """
    it = iter(refs)
    xst_ref, wst_ref, sst_ref = next(it), next(it), next(it)
    blk_refs = []
    for cb in cfgs:
        blk_refs.append([next(it) for _ in range(8 if cb["has_ds"] else 6)])
    fcw_ref, fcb_ref = next(it), next(it)
    o_ref = next(it)
    buf_ref = next(it)

    # ---- stem: 7-tap stride-2 conv as ONE MXU dot over K = taps*C_in ----
    x = jnp.dot(xst_ref[...].astype(jnp.bfloat16), wst_ref[...],
                preferred_element_type=jnp.float32)
    x = _leaky(x + sst_ref[...])                             # (L0, C0_pad) f32

    # ---- Bottleneck blocks: everything stays in VMEM / vregs ----
    for cb, br in zip(cfgs, blk_refs):
        if cb["has_ds"]:
            w1, s1, w2, s2, w3, s3, wd, sd = br
        else:
            w1, s1, w2, s2, w3, s3 = br
        L, s, d = cb["l_in"], cb["stride"], cb["dilation"]
        l_out, cin_pad, w_pad = cb["l_out"], cb["cin_pad"], cb["w_pad"]

        # identity / 1x1 downsample (strided read goes through the scratch)
        if cb["has_ds"]:
            if s == 1:
                xs = x
            else:
                buf_ref[pl.ds(0, L), :cin_pad] = x
                xs = buf_ref[pl.ds(0, l_out, stride=s), :cin_pad]
            identity = jnp.dot(xs.astype(jnp.bfloat16), wd[...],
                               preferred_element_type=jnp.float32) + sd[...]
        else:
            identity = x               # stride == 1 and cin_pad == cout_pad

        # conv1 (1x1) + bn1 + act
        t1 = _leaky(jnp.dot(x.astype(jnp.bfloat16), w1[...],
                            preferred_element_type=jnp.float32) + s1[...])

        # conv2 (3 taps, stride, dilation) + bn2 + act.  Halo-only zeroing,
        # then a single MXU dot with K = 3*w_pad over lane-concatenated taps.
        buf_ref[pl.ds(0, d), :] = jnp.zeros((d, buf_ref.shape[1]),
                                            buf_ref.dtype)
        buf_ref[pl.ds(d, L), :w_pad] = t1
        buf_ref[pl.ds(d + L, d), :] = jnp.zeros((d, buf_ref.shape[1]),
                                                buf_ref.dtype)
        taps = []
        for j in range(3):
            if s == 1:
                taps.append(buf_ref[pl.ds(j * d, l_out), :w_pad])
            else:
                taps.append(buf_ref[pl.ds(j * d, l_out, stride=s), :w_pad])
        t2 = jnp.dot(jnp.concatenate(taps, axis=-1).astype(jnp.bfloat16),
                     w2[...], preferred_element_type=jnp.float32)
        t2 = _leaky(t2 + s2[...])

        # conv3 (1x1) + bn3 + residual + act
        y = jnp.dot(t2.astype(jnp.bfloat16), w3[...],
                    preferred_element_type=jnp.float32) + s3[...]
        x = _leaky(y + identity)                             # (l_out, cout_pad)

    # ---- head: global avg-pool + Linear + LogSoftmax (fused, f32) ----
    pooled = jnp.sum(x, axis=0, keepdims=True) * inv_lfin    # (1, C_pad)
    logits = jnp.dot(pooled, fcw_ref[...],
                     preferred_element_type=jnp.float32) + fcb_ref[...]
    m = jnp.max(logits, axis=-1, keepdims=True)
    lse = jnp.log(jnp.sum(jnp.exp(logits - m), axis=-1, keepdims=True)) + m
    o_ref[...] = jnp.broadcast_to(logits - lse, o_ref.shape).astype(o_ref.dtype)


# --------------------------------------------------------------------------
# pallas_call wrapper
# --------------------------------------------------------------------------
def resnet_forward(ip, x_ncl):
    """x_ncl: (N, C, L) PyTorch-layout input -> (N, num_classes) log-probs."""
    n, c_in, length = x_ncl.shape
    sp = ip["stem"]
    taps, stride, pad = sp["taps"], sp["stride"], sp["pad"]

    # Host-side 7-tap/stride-2 gather of the raw input at TRUE channel width
    # (a few KB) -> the stem becomes a single in-kernel MXU dot.  No 128-lane
    # inflation of the input and no padded-L HBM copy.
    x_nlc = jnp.transpose(x_ncl, (0, 2, 1)).astype(jnp.float32)
    l0 = (length + 2 * pad - taps) // stride + 1
    xp = jnp.pad(x_nlc, ((0, 0), (pad, pad), (0, 0)))
    cols = [xp[:, j: j + stride * (l0 - 1) + 1: stride, :] for j in range(taps)]
    xs = jnp.concatenate(cols, axis=-1)                       # (N, L0, taps*C)
    kdim_pad = sp["w"].shape[0]
    xs = jnp.pad(xs, ((0, 0), (0, 0), (0, kdim_pad - taps * c_in)))

    # Static per-block geometry.
    cfgs = []
    l_in = l0
    for bp in ip["blocks"]:
        s = bp["stride"]
        l_out = (l_in - 1) // s + 1
        cfgs.append(dict(l_in=l_in, l_out=l_out, stride=s,
                         dilation=bp["dilation"], has_ds="wd" in bp,
                         cin_pad=bp["w1"].shape[0], w_pad=bp["w2"].shape[-1]))
        l_in = l_out
    l_final = l_in

    # Scratch sized for the largest halo-padded conv2 input across all blocks.
    buf_rows, buf_lanes = SUB, LANE
    for cb in cfgs:
        buf_rows = max(buf_rows, _round_up(cb["l_in"] + 2 * cb["dilation"], SUB))
        buf_lanes = max(buf_lanes, cb["w_pad"], cb["cin_pad"])

    nc_pad = ip["fc_w"].shape[1]

    # Build (args, in_specs) in lockstep.  Weights use constant index_maps so
    # they stay resident in VMEM across the batch grid.
    args = [xs, sp["w"], sp["shift"]]
    in_specs = [
        pl.BlockSpec((None, l0, kdim_pad), lambda i: (i, 0, 0)),
        pl.BlockSpec(sp["w"].shape, lambda i: (0, 0)),
        pl.BlockSpec(sp["shift"].shape, lambda i: (0, 0)),
    ]
    for bp in ip["blocks"]:
        names = ["w1", "s1", "w2", "s2", "w3", "s3"]
        if "wd" in bp:
            names += ["wd", "sd"]
        for nm in names:
            args.append(bp[nm])
            in_specs.append(pl.BlockSpec(bp[nm].shape, lambda i: (0, 0)))
    args += [ip["fc_w"], ip["fc_b"]]
    in_specs += [pl.BlockSpec(ip["fc_w"].shape, lambda i: (0, 0)),
                 pl.BlockSpec(ip["fc_b"].shape, lambda i: (0, 0))]

    kern = functools.partial(_fused_resnet_kernel, cfgs=tuple(cfgs),
                             inv_lfin=1.0 / float(l_final))
    out = pl.pallas_call(
        kern,
        out_shape=jax.ShapeDtypeStruct((n, SUB, nc_pad), jnp.float32),
        grid=(n,),
        in_specs=in_specs,
        out_specs=pl.BlockSpec((None, SUB, nc_pad), lambda i: (i, 0, 0)),
        scratch_shapes=[pltpu.VMEM((buf_rows, buf_lanes), jnp.float32)],
        compiler_params=pltpu.CompilerParams(
            dimension_semantics=("parallel",),
            vmem_limit_bytes=32 * 1024 * 1024),
    )(*args)
    return out[:, 0, :ip["num_classes"]]


# --------------------------------------------------------------------------
# Parameter construction (deterministic, mirrors ResNet.__init__/_make_layer)
# --------------------------------------------------------------------------
def build_resnet_params(key, layers, dilation, kernels, num_channels, num_classes):
    keys = iter(jax.random.split(key, 512))

    def conv_w(cout, cin, k):
        # kaiming_normal_(mode='fan_out', nonlinearity='leaky_relu')
        fan_out = cout * k
        std = (2.0 / fan_out) ** 0.5
        return std * jax.random.normal(next(keys), (cout, cin, k), jnp.float32)

    def bn(c):
        return dict(gamma=jnp.ones((c,), jnp.float32),
                    beta=jnp.zeros((c,), jnp.float32),
                    mean=jnp.zeros((c,), jnp.float32),
                    var=jnp.ones((c,), jnp.float32))

    params = {"conv1": conv_w(kernels[0], num_channels, 7), "bn1": bn(kernels[0])}

    inplanes = kernels[0]
    resnet_dilation = 1
    stages = []
    for nblocks, d, k in zip(layers, dilation, kernels):
        planes = k
        stride = 2
        width = planes  # groups=1, base_width=64
        blocks = []

        blk = {"conv1": conv_w(width, inplanes, 1), "bn1": bn(width),
               "conv2": conv_w(width, width, 3), "bn2": bn(width),
               "conv3": conv_w(planes * EXPANSION, width, 1),
               "bn3": bn(planes * EXPANSION),
               "stride": stride, "dilation": d}
        if stride != 1 or inplanes != planes * EXPANSION:
            blk["downsample"] = dict(conv=conv_w(planes * EXPANSION, inplanes, 1),
                                     bn=bn(planes * EXPANSION), stride=stride)
        blocks.append(blk)
        inplanes = planes * EXPANSION

        for _ in range(1, nblocks):
            blocks.append({"conv1": conv_w(width, inplanes, 1), "bn1": bn(width),
                           "conv2": conv_w(width, width, 3), "bn2": bn(width),
                           "conv3": conv_w(planes * EXPANSION, width, 1),
                           "bn3": bn(planes * EXPANSION),
                           "stride": 1, "dilation": resnet_dilation})
        stages.append(blocks)
    params["layers"] = stages

    fc_in = kernels[-1] * EXPANSION  # see TODO(synk) at top of file
    bound = 1.0 / (fc_in ** 0.5)
    params["fc_w"] = bound * jax.random.normal(next(keys), (fc_in, num_classes),
                                               jnp.float32)
    params["fc_b"] = bound * jax.random.normal(next(keys), (num_classes,),
                                               jnp.float32)
    return params


def _fold_conv_bn(w, bn, cin_pad, cout_pad):
    """Fold BN scale into the conv weight; pad channels to target widths.

    Returns ((K, Cin_pad, Cout_pad) bf16 weight, (1, Cout_pad) f32 shift)."""
    cout, cin, _ = w.shape
    scale = bn["gamma"] / jnp.sqrt(bn["var"] + BN_EPS)
    shift = bn["beta"] - bn["mean"] * scale
    wf = w * scale[:, None, None]
    wk = jnp.transpose(wf, (2, 1, 0))                         # (K, Cin, Cout)
    wk = jnp.pad(wk, ((0, 0), (0, cin_pad - cin), (0, cout_pad - cout)))
    sh = jnp.pad(shift, (0, cout_pad - cout)).reshape(1, cout_pad)
    return wk.astype(jnp.bfloat16), sh.astype(jnp.float32)


def prepare_inference_params(params):
    """One-time BN fold + channel padding + tap-major weight layouts."""
    ip = {}

    # Stem: keep the input-channel dim at its TRUE width; contraction layout
    # is [tap-major, channel-minor], padded to a multiple of 8.
    cout0, cin0, k0 = params["conv1"].shape
    c0_pad = _round_up(cout0, LANE)
    wst, sst = _fold_conv_bn(params["conv1"], params["bn1"], cin0, c0_pad)
    kdim = k0 * cin0
    kdim_pad = _round_up(kdim, SUB)
    wst = jnp.pad(wst.reshape(kdim, c0_pad), ((0, kdim_pad - kdim), (0, 0)))
    ip["stem"] = dict(w=wst, shift=sst, taps=k0, stride=2, pad=3)

    blocks = []
    for stage in params["layers"]:
        for blk in stage:
            width, cin, _ = blk["conv1"].shape
            cout = blk["conv3"].shape[0]
            cinp = _round_up(cin, LANE)
            wp = _round_up(width, LANE)
            coutp = _round_up(cout, LANE)
            w1, s1 = _fold_conv_bn(blk["conv1"], blk["bn1"], cinp, wp)
            w2, s2 = _fold_conv_bn(blk["conv2"], blk["bn2"], wp, wp)
            w3, s3 = _fold_conv_bn(blk["conv3"], blk["bn3"], wp, coutp)
            b = dict(w1=w1[0], s1=s1,
                     w2=w2.reshape(3 * wp, wp), s2=s2,   # tap-concatenated K
                     w3=w3[0], s3=s3,
                     stride=blk["stride"], dilation=blk["dilation"])
            if "downsample" in blk:
                ds = blk["downsample"]
                wd, sd = _fold_conv_bn(ds["conv"], ds["bn"], cinp, coutp)
                b["wd"], b["sd"] = wd[0], sd
            blocks.append(b)
    ip["blocks"] = blocks

    fc_in, nc = params["fc_w"].shape
    cfp, ncp = _round_up(fc_in, LANE), _round_up(nc, LANE)
    fw = jnp.pad(params["fc_w"], ((0, cfp - fc_in), (0, ncp - nc))).astype(jnp.float32)
    fb = jnp.pad(params["fc_b"], (0, ncp - nc))
    # Padded (fake) classes get a very negative bias so LogSoftmax ignores them.
    fb = jnp.where(jnp.arange(ncp) >= nc, -1e30, fb).reshape(1, ncp).astype(jnp.float32)
    ip["fc_w"], ip["fc_b"] = fw, fb
    ip["num_classes"] = nc
    return ip


# --------------------------------------------------------------------------
# Pure-JAX reference (mirrors the PyTorch forward, eval-mode BN) for checking
# --------------------------------------------------------------------------
def resnet_reference(params, x_ncl):
    def conv(x, w, stride=1, padding=0, dil=1):
        return jax.lax.conv_general_dilated(
            x, w, window_strides=(stride,), padding=[(padding, padding)],
            rhs_dilation=(dil,), dimension_numbers=("NCH", "OIH", "NCH"))

    def bn(x, p):
        scale = p["gamma"] / jnp.sqrt(p["var"] + BN_EPS)
        shift = p["beta"] - p["mean"] * scale
        return x * scale[None, :, None] + shift[None, :, None]

    x = _leaky(bn(conv(x_ncl, params["conv1"], stride=2, padding=3),
                  params["bn1"]))
    for stage in params["layers"]:
        for blk in stage:
            identity = x
            out = _leaky(bn(conv(x, blk["conv1"]), blk["bn1"]))
            out = _leaky(bn(conv(out, blk["conv2"], stride=blk["stride"],
                                 padding=blk["dilation"], dil=blk["dilation"]),
                            blk["bn2"]))
            out = bn(conv(out, blk["conv3"]), blk["bn3"])
            if "downsample" in blk:
                ds = blk["downsample"]
                identity = bn(conv(x, ds["conv"], stride=ds["stride"]), ds["bn"])
            x = _leaky(out + identity)
    pooled = jnp.mean(x, axis=-1)                            # (N, C)
    logits = pooled @ params["fc_w"] + params["fc_b"]
    return jax.nn.log_softmax(logits, axis=-1)


# --------------------------------------------------------------------------
# Demo
# --------------------------------------------------------------------------
if __name__ == "__main__":
    key = jax.random.PRNGKey(0)
    k_param, k_input = jax.random.split(key)

    # Small config: ResNet(Bottleneck, layers=[1, 1], dilation=[1, 1],
    #                      kernels=[8, 16], num_channels=1, num_classes=4)
    layers = [1, 1]
    dilation = [1, 1]
    kernels = [8, 16]
    num_channels = 1
    num_classes = 4

    params = build_resnet_params(k_param, layers, dilation, kernels,
                                 num_channels, num_classes)
    ip = prepare_inference_params(params)

    # ECG-style input: (batch=2, channels=1, seq=64), PyTorch NCL layout.
    x = jax.random.normal(k_input, (2, num_channels, 64), jnp.float32)

    out = jax.block_until_ready(resnet_forward(ip, x))
    ref = jax.block_until_ready(resnet_reference(params, x))

    assert out.shape == (2, num_classes), out.shape
    assert bool(jnp.all(jnp.isfinite(out)))
    # Log-softmax rows should sum (in prob space) to 1.
    assert bool(jnp.allclose(jnp.sum(jnp.exp(out), axis=1), 1.0, atol=1e-3))
    # bf16 MXU operands vs. the f32 reference: loose but meaningful tolerance.
    assert float(jnp.max(jnp.abs(out - ref))) < 1e-1, (out, ref)
    print("KERNEL_OK")
</pallas_src>

<mosaic_0001>
module attributes {stable_mosaic.version = 11 : i64} {
  func.func @_fused_resnet_kernel(%arg0: i32, %arg1: memref<1x32x8xf32, #tpu.memory_space<vmem>>, %arg2: memref<8x128xbf16, #tpu.memory_space<vmem>>, %arg3: memref<1x128xf32, #tpu.memory_space<vmem>>, %arg4: memref<128x128xbf16, #tpu.memory_space<vmem>>, %arg5: memref<1x128xf32, #tpu.memory_space<vmem>>, %arg6: memref<384x128xbf16, #tpu.memory_space<vmem>>, %arg7: memref<1x128xf32, #tpu.memory_space<vmem>>, %arg8: memref<128x128xbf16, #tpu.memory_space<vmem>>, %arg9: memref<1x128xf32, #tpu.memory_space<vmem>>, %arg10: memref<128x128xbf16, #tpu.memory_space<vmem>>, %arg11: memref<1x128xf32, #tpu.memory_space<vmem>>, %arg12: memref<128x128xbf16, #tpu.memory_space<vmem>>, %arg13: memref<1x128xf32, #tpu.memory_space<vmem>>, %arg14: memref<384x128xbf16, #tpu.memory_space<vmem>>, %arg15: memref<1x128xf32, #tpu.memory_space<vmem>>, %arg16: memref<128x128xbf16, #tpu.memory_space<vmem>>, %arg17: memref<1x128xf32, #tpu.memory_space<vmem>>, %arg18: memref<128x128xbf16, #tpu.memory_space<vmem>>, %arg19: memref<1x128xf32, #tpu.memory_space<vmem>>, %arg20: memref<128x128xf32, #tpu.memory_space<vmem>>, %arg21: memref<1x128xf32, #tpu.memory_space<vmem>>, %arg22: memref<1x8x128xf32, #tpu.memory_space<vmem>>, %arg23: memref<40x128xf32, #tpu.memory_space<vmem>>) attributes {dimension_semantics = [#tpu.dimension_semantics<parallel>], iteration_bounds = array<i64: 2>, scalar_prefetch = 0 : i64, scratch_operands = 1 : i64, tpu.core_type = #tpu.core_type<tc>, window_params = [{transform_indices = @transform_0, window_bounds = array<i64: 1, 32, 8>}, {pipeline_mode = #tpu.pipeline_mode<synchronous>, transform_indices = @transform_1, window_bounds = array<i64: 8, 128>}, {pipeline_mode = #tpu.pipeline_mode<synchronous>, transform_indices = @transform_2, window_bounds = array<i64: 1, 128>}, {pipeline_mode = #tpu.pipeline_mode<synchronous>, transform_indices = @transform_3, window_bounds = array<i64: 128, 128>}, {pipeline_mode = #tpu.pipeline_mode<synchronous>, transform_indices = @transform_4, window_bounds = array<i64: 1, 128>}, {pipeline_mode = #tpu.pipeline_mode<synchronous>, transform_indices = @transform_5, window_bounds = array<i64: 384, 128>}, {pipeline_mode = #tpu.pipeline_mode<synchronous>, transform_indices = @transform_6, window_bounds = array<i64: 1, 128>}, {pipeline_mode = #tpu.pipeline_mode<synchronous>, transform_indices = @transform_7, window_bounds = array<i64: 128, 128>}, {pipeline_mode = #tpu.pipeline_mode<synchronous>, transform_indices = @transform_8, window_bounds = array<i64: 1, 128>}, {pipeline_mode = #tpu.pipeline_mode<synchronous>, transform_indices = @transform_9, window_bounds = array<i64: 128, 128>}, {pipeline_mode = #tpu.pipeline_mode<synchronous>, transform_indices = @transform_10, window_bounds = array<i64: 1, 128>}, {pipeline_mode = #tpu.pipeline_mode<synchronous>, transform_indices = @transform_11, window_bounds = array<i64: 128, 128>}, {pipeline_mode = #tpu.pipeline_mode<synchronous>, transform_indices = @transform_12, window_bounds = array<i64: 1, 128>}, {pipeline_mode = #tpu.pipeline_mode<synchronous>, transform_indices = @transform_13, window_bounds = array<i64: 384, 128>}, {pipeline_mode = #tpu.pipeline_mode<synchronous>, transform_indices = @transform_14, window_bounds = array<i64: 1, 128>}, {pipeline_mode = #tpu.pipeline_mode<synchronous>, transform_indices = @transform_15, window_bounds = array<i64: 128, 128>}, {pipeline_mode = #tpu.pipeline_mode<synchronous>, transform_indices = @transform_16, window_bounds = array<i64: 1, 128>}, {pipeline_mode = #tpu.pipeline_mode<synchronous>, transform_indices = @transform_17, window_bounds = array<i64: 128, 128>}, {pipeline_mode = #tpu.pipeline_mode<synchronous>, transform_indices = @transform_18, window_bounds = array<i64: 1, 128>}, {pipeline_mode = #tpu.pipeline_mode<synchronous>, transform_indices = @transform_19, window_bounds = array<i64: 128, 128>}, {pipeline_mode = #tpu.pipeline_mode<synchronous>, transform_indices = @transform_20, window_bounds = array<i64: 1, 128>}, {transform_indices = @transform_21, window_bounds = array<i64: 1, 8, 128>}]} {
    %c0 = arith.constant 0 : index
    %c0_0 = arith.constant 0 : index
    %c0_1 = arith.constant 0 : index
    %0 = vector.load %arg1[%c0, %c0_0, %c0_1] : memref<1x32x8xf32, #tpu.memory_space<vmem>>, vector<1x32x8xf32>
    %1 = vector.shape_cast %0 : vector<1x32x8xf32> to vector<32x8xf32>
    %2 = arith.truncf %1 : vector<32x8xf32> to vector<32x8xbf16>
    %c0_2 = arith.constant 0 : index
    %c0_3 = arith.constant 0 : index
    %3 = vector.load %arg2[%c0_2, %c0_3] : memref<8x128xbf16, #tpu.memory_space<vmem>>, vector<8x128xbf16>
    %cst = arith.constant dense<0.000000e+00> : vector<32x128xf32>
    %4 = tpu.matmul %2, %3, %cst {dimension_numbers = #tpu.dot_dimension_numbers<[1], [0], [0], [1], [0, 0, 1, 1], [], []>} : vector<32x8xbf16>, vector<8x128xbf16>, vector<32x128xf32> -> vector<32x128xf32>
    %c0_4 = arith.constant 0 : index
    %c0_5 = arith.constant 0 : index
    %5 = vector.load %arg3[%c0_4, %c0_5] : memref<1x128xf32, #tpu.memory_space<vmem>>, vector<1x128xf32>
    %6 = vector.broadcast %5 : vector<1x128xf32> to vector<32x128xf32>
    %7 = arith.addf %4, %6 : vector<32x128xf32>
    %cst_6 = arith.constant 0.000000e+00 : f32
    %8 = vector.broadcast %cst_6 : f32 to vector<32x128xf32>
    %9 = arith.cmpf oge, %7, %8 : vector<32x128xf32>
    %cst_7 = arith.constant 0.00999999977 : f32
    %10 = vector.broadcast %cst_7 : f32 to vector<32x128xf32>
    %11 = arith.mulf %7, %10 : vector<32x128xf32>
    %12 = arith.select %9, %7, %11 : vector<32x128xi1>, vector<32x128xf32>
    %c0_8 = arith.constant 0 : index
    %c0_9 = arith.constant 0 : index
    %13 = vector.load %arg23[%c0_8, %c0_9] : memref<40x128xf32, #tpu.memory_space<vmem>>, vector<32x128xf32>
    tpu.vector_store %arg23[%c0_8, %c0_9], %12 {strides = array<i32>} : memref<40x128xf32, #tpu.memory_space<vmem>>, vector<32x128xf32>,
    %c0_10 = arith.constant 0 : index
    %c0_11 = arith.constant 0 : index
    %14 = tpu.strided_load %arg23[%c0_10, %c0_11] {strides = array<i32: 2, 1>} : memref<40x128xf32, #tpu.memory_space<vmem>>, vector<16x128xf32>
    %15 = arith.truncf %14 : vector<16x128xf32> to vector<16x128xbf16>
    %c0_12 = arith.constant 0 : index
    %c0_13 = arith.constant 0 : index
    %16 = vector.load %arg10[%c0_12, %c0_13] : memref<128x128xbf16, #tpu.memory_space<vmem>>, vector<128x128xbf16>
    %cst_14 = arith.constant dense<0.000000e+00> : vector<16x128xf32>
    %17 = tpu.matmul %15, %16, %cst_14 {dimension_numbers = #tpu.dot_dimension_numbers<[1], [0], [0], [1], [0, 0, 1, 1], [], []>} : vector<16x128xbf16>, vector<128x128xbf16>, vector<16x128xf32> -> vector<16x128xf32>
    %c0_15 = arith.constant 0 : index
    %c0_16 = arith.constant 0 : index
    %18 = vector.load %arg11[%c0_15, %c0_16] : memref<1x128xf32, #tpu.memory_space<vmem>>, vector<1x128xf32>
    %19 = vector.broadcast %18 : vector<1x128xf32> to vector<16x128xf32>
    %20 = arith.addf %17, %19 : vector<16x128xf32>
    %21 = arith.truncf %12 : vector<32x128xf32> to vector<32x128xbf16>
    %c0_17 = arith.constant 0 : index
    %c0_18 = arith.constant 0 : index
    %22 = vector.load %arg4[%c0_17, %c0_18] : memref<128x128xbf16, #tpu.memory_space<vmem>>, vector<128x128xbf16>
    %cst_19 = arith.constant dense<0.000000e+00> : vector<32x128xf32>
    %23 = tpu.matmul %21, %22, %cst_19 {dimension_numbers = #tpu.dot_dimension_numbers<[1], [0], [0], [1], [0, 0, 1, 1], [], []>} : vector<32x128xbf16>, vector<128x128xbf16>, vector<32x128xf32> -> vector<32x128xf32>
    %c0_20 = arith.constant 0 : index
    %c0_21 = arith.constant 0 : index
    %24 = vector.load %arg5[%c0_20, %c0_21] : memref<1x128xf32, #tpu.memory_space<vmem>>, vector<1x128xf32>
    %25 = vector.broadcast %24 : vector<1x128xf32> to vector<32x128xf32>
    %26 = arith.addf %23, %25 : vector<32x128xf32>
    %cst_22 = arith.constant 0.000000e+00 : f32
    %27 = vector.broadcast %cst_22 : f32 to vector<32x128xf32>
    %28 = arith.cmpf oge, %26, %27 : vector<32x128xf32>
    %cst_23 = arith.constant 0.00999999977 : f32
    %29 = vector.broadcast %cst_23 : f32 to vector<32x128xf32>
    %30 = arith.mulf %26, %29 : vector<32x128xf32>
    %31 = arith.select %28, %26, %30 : vector<32x128xi1>, vector<32x128xf32>
    %cst_24 = arith.constant 0.000000e+00 : f32
    %32 = vector.broadcast %cst_24 : f32 to vector<1x128xf32>
    %c0_25 = arith.constant 0 : index
    %c0_26 = arith.constant 0 : index
    %33 = vector.load %arg23[%c0_25, %c0_26] : memref<40x128xf32, #tpu.memory_space<vmem>>, vector<1x128xf32>
    tpu.vector_store %arg23[%c0_25, %c0_26], %32 {strides = array<i32>} : memref<40x128xf32, #tpu.memory_space<vmem>>, vector<1x128xf32>,
    %c1 = arith.constant 1 : index
    %c0_27 = arith.constant 0 : index
    %34 = vector.load %arg23[%c1, %c0_27] : memref<40x128xf32, #tpu.memory_space<vmem>>, vector<32x128xf32>
    tpu.vector_store %arg23[%c1, %c0_27], %31 {strides = array<i32>} : memref<40x128xf32, #tpu.memory_space<vmem>>, vector<32x128xf32>,
    %cst_28 = arith.constant 0.000000e+00 : f32
    %35 = vector.broadcast %cst_28 : f32 to vector<1x128xf32>
    %c33 = arith.constant 33 : index
    %c0_29 = arith.constant 0 : index
    %36 = vector.load %arg23[%c33, %c0_29] : memref<40x128xf32, #tpu.memory_space<vmem>>, vector<1x128xf32>
    tpu.vector_store %arg23[%c33, %c0_29], %35 {strides = array<i32>} : memref<40x128xf32, #tpu.memory_space<vmem>>, vector<1x128xf32>,
    %c0_30 = arith.constant 0 : index
    %c0_31 = arith.constant 0 : index
    %37 = tpu.strided_load %arg23[%c0_30, %c0_31] {strides = array<i32: 2, 1>} : memref<40x128xf32, #tpu.memory_space<vmem>>, vector<16x128xf32>
    %c1_32 = arith.constant 1 : index
    %c0_33 = arith.constant 0 : index
    %38 = tpu.strided_load %arg23[%c1_32, %c0_33] {strides = array<i32: 2, 1>} : memref<40x128xf32, #tpu.memory_space<vmem>>, vector<16x128xf32>
    %c2 = arith.constant 2 : index
    %c0_34 = arith.constant 0 : index
    %39 = tpu.strided_load %arg23[%c2, %c0_34] {strides = array<i32: 2, 1>} : memref<40x128xf32, #tpu.memory_space<vmem>>, vector<16x128xf32>
    %40 = tpu.concatenate %37, %38, %39 in 1 : vector<16x128xf32>, vector<16x128xf32>, vector<16x128xf32> -> vector<16x384xf32>
    %41 = arith.truncf %40 : vector<16x384xf32> to vector<16x384xbf16>
    %c0_35 = arith.constant 0 : index
    %c0_36 = arith.constant 0 : index
    %42 = vector.load %arg6[%c0_35, %c0_36] : memref<384x128xbf16, #tpu.memory_space<vmem>>, vector<384x128xbf16>
    %cst_37 = arith.constant dense<0.000000e+00> : vector<16x128xf32>
    %43 = tpu.matmul %41, %42, %cst_37 {dimension_numbers = #tpu.dot_dimension_numbers<[1], [0], [0], [1], [0, 0, 1, 1], [], []>} : vector<16x384xbf16>, vector<384x128xbf16>, vector<16x128xf32> -> vector<16x128xf32>
    %c0_38 = arith.constant 0 : index
    %c0_39 = arith.constant 0 : index
    %44 = vector.load %arg7[%c0_38, %c0_39] : memref<1x128xf32, #tpu.memory_space<vmem>>, vector<1x128xf32>
    %45 = vector.broadcast %44 : vector<1x128xf32> to vector<16x128xf32>
    %46 = arith.addf %43, %45 : vector<16x128xf32>
    %cst_40 = arith.constant 0.000000e+00 : f32
    %47 = vector.broadcast %cst_40 : f32 to vector<16x128xf32>
    %48 = arith.cmpf oge, %46, %47 : vector<16x128xf32>
    %cst_41 = arith.constant 0.00999999977 : f32
    %49 = vector.broadcast %cst_41 : f32 to vector<16x128xf32>
    %50 = arith.mulf %46, %49 : vector<16x128xf32>
    %51 = arith.select %48, %46, %50 : vector<16x128xi1>, vector<16x128xf32>
    %52 = arith.truncf %51 : vector<16x128xf32> to vector<16x128xbf16>
    %c0_42 = arith.constant 0 : index
    %c0_43 = arith.constant 0 : index
    %53 = vector.load %arg8[%c0_42, %c0_43] : memref<128x128xbf16, #tpu.memory_space<vmem>>, vector<128x128xbf16>
    %cst_44 = arith.constant dense<0.000000e+00> : vector<16x128xf32>
    %54 = tpu.matmul %52, %53, %cst_44 {dimension_numbers = #tpu.dot_dimension_numbers<[1], [0], [0], [1], [0, 0, 1, 1], [], []>} : vector<16x128xbf16>, vector<128x128xbf16>, vector<16x128xf32> -> vector<16x128xf32>
    %c0_45 = arith.constant 0 : index
    %c0_46 = arith.constant 0 : index
    %55 = vector.load %arg9[%c0_45, %c0_46] : memref<1x128xf32, #tpu.memory_space<vmem>>, vector<1x128xf32>
    %56 = vector.broadcast %55 : vector<1x128xf32> to vector<16x128xf32>
    %57 = arith.addf %54, %56 : vector<16x128xf32>
    %58 = arith.addf %57, %20 : vector<16x128xf32>
    %cst_47 = arith.constant 0.000000e+00 : f32
    %59 = vector.broadcast %cst_47 : f32 to vector<16x128xf32>
    %60 = arith.cmpf oge, %58, %59 : vector<16x128xf32>
    %cst_48 = arith.constant 0.00999999977 : f32
    %61 = vector.broadcast %cst_48 : f32 to vector<16x128xf32>
    %62 = arith.mulf %58, %61 : vector<16x128xf32>
    %63 = arith.select %60, %58, %62 : vector<16x128xi1>, vector<16x128xf32>
    %c0_49 = arith.constant 0 : index
    %c0_50 = arith.constant 0 : index
    %64 = vector.load %arg23[%c0_49, %c0_50] : memref<40x128xf32, #tpu.memory_space<vmem>>, vector<16x128xf32>
    tpu.vector_store %arg23[%c0_49, %c0_50], %63 {strides = array<i32>} : memref<40x128xf32, #tpu.memory_space<vmem>>, vector<16x128xf32>,
    %c0_51 = arith.constant 0 : index
    %c0_52 = arith.constant 0 : index
    %65 = tpu.strided_load %arg23[%c0_51, %c0_52] {strides = array<i32: 2, 1>} : memref<40x128xf32, #tpu.memory_space<vmem>>, vector<8x128xf32>
    %66 = arith.truncf %65 : vector<8x128xf32> to vector<8x128xbf16>
    %c0_53 = arith.constant 0 : index
    %c0_54 = arith.constant 0 : index
    %67 = vector.load %arg18[%c0_53, %c0_54] : memref<128x128xbf16, #tpu.memory_space<vmem>>, vector<128x128xbf16>
    %cst_55 = arith.constant dense<0.000000e+00> : vector<8x128xf32>
    %68 = tpu.matmul %66, %67, %cst_55 {dimension_numbers = #tpu.dot_dimension_numbers<[1], [0], [0], [1], [0, 0, 1, 1], [], []>} : vector<8x128xbf16>, vector<128x128xbf16>, vector<8x128xf32> -> vector<8x128xf32>
    %c0_56 = arith.constant 0 : index
    %c0_57 = arith.constant 0 : index
    %69 = vector.load %arg19[%c0_56, %c0_57] : memref<1x128xf32, #tpu.memory_space<vmem>>, vector<1x128xf32>
    %70 = vector.broadcast %69 : vector<1x128xf32> to vector<8x128xf32>
    %71 = arith.addf %68, %70 : vector<8x128xf32>
    %72 = arith.truncf %63 : vector<16x128xf32> to vector<16x128xbf16>
    %c0_58 = arith.constant 0 : index
    %c0_59 = arith.constant 0 : index
    %73 = vector.load %arg12[%c0_58, %c0_59] : memref<128x128xbf16, #tpu.memory_space<vmem>>, vector<128x128xbf16>
    %cst_60 = arith.constant dense<0.000000e+00> : vector<16x128xf32>
    %74 = tpu.matmul %72, %73, %cst_60 {dimension_numbers = #tpu.dot_dimension_numbers<[1], [0], [0], [1], [0, 0, 1, 1], [], []>} : vector<16x128xbf16>, vector<128x128xbf16>, vector<16x128xf32> -> vector<16x128xf32>
    %c0_61 = arith.constant 0 : index
    %c0_62 = arith.constant 0 : index
    %75 = vector.load %arg13[%c0_61, %c0_62] : memref<1x128xf32, #tpu.memory_space<vmem>>, vector<1x128xf32>
    %76 = vector.broadcast %75 : vector<1x128xf32> to vector<16x128xf32>
    %77 = arith.addf %74, %76 : vector<16x128xf32>
    %cst_63 = arith.constant 0.000000e+00 : f32
    %78 = vector.broadcast %cst_63 : f32 to vector<16x128xf32>
    %79 = arith.cmpf oge, %77, %78 : vector<16x128xf32>
    %cst_64 = arith.constant 0.00999999977 : f32
    %80 = vector.broadcast %cst_64 : f32 to vector<16x128xf32>
    %81 = arith.mulf %77, %80 : vector<16x128xf32>
    %82 = arith.select %79, %77, %81 : vector<16x128xi1>, vector<16x128xf32>
    %cst_65 = arith.constant 0.000000e+00 : f32
    %83 = vector.broadcast %cst_65 : f32 to vector<1x128xf32>
    %c0_66 = arith.constant 0 : index
    %c0_67 = arith.constant 0 : index
    %84 = vector.load %arg23[%c0_66, %c0_67] : memref<40x128xf32, #tpu.memory_space<vmem>>, vector<1x128xf32>
    tpu.vector_store %arg23[%c0_66, %c0_67], %83 {strides = array<i32>} : memref<40x128xf32, #tpu.memory_space<vmem>>, vector<1x128xf32>,
    %c1_68 = arith.constant 1 : index
    %c0_69 = arith.constant 0 : index
    %85 = vector.load %arg23[%c1_68, %c0_69] : memref<40x128xf32, #tpu.memory_space<vmem>>, vector<16x128xf32>
    tpu.vector_store %arg23[%c1_68, %c0_69], %82 {strides = array<i32>} : memref<40x128xf32, #tpu.memory_space<vmem>>, vector<16x128xf32>,
    %cst_70 = arith.constant 0.000000e+00 : f32
    %86 = vector.broadcast %cst_70 : f32 to vector<1x128xf32>
    %c17 = arith.constant 17 : index
    %c0_71 = arith.constant 0 : index
    %87 = vector.load %arg23[%c17, %c0_71] : memref<40x128xf32, #tpu.memory_space<vmem>>, vector<1x128xf32>
    tpu.vector_store %arg23[%c17, %c0_71], %86 {strides = array<i32>} : memref<40x128xf32, #tpu.memory_space<vmem>>, vector<1x128xf32>,
    %c0_72 = arith.constant 0 : index
    %c0_73 = arith.constant 0 : index
    %88 = tpu.strided_load %arg23[%c0_72, %c0_73] {strides = array<i32: 2, 1>} : memref<40x128xf32, #tpu.memory_space<vmem>>, vector<8x128xf32>
    %c1_74 = arith.constant 1 : index
    %c0_75 = arith.constant 0 : index
    %89 = tpu.strided_load %arg23[%c1_74, %c0_75] {strides = array<i32: 2, 1>} : memref<40x128xf32, #tpu.memory_space<vmem>>, vector<8x128xf32>
    %c2_76 = arith.constant 2 : index
    %c0_77 = arith.constant 0 : index
    %90 = tpu.strided_load %arg23[%c2_76, %c0_77] {strides = array<i32: 2, 1>} : memref<40x128xf32, #tpu.memory_space<vmem>>, vector<8x128xf32>
    %91 = tpu.concatenate %88, %89, %90 in 1 : vector<8x128xf32>, vector<8x128xf32>, vector<8x128xf32> -> vector<8x384xf32>
    %92 = arith.truncf %91 : vector<8x384xf32> to vector<8x384xbf16>
    %c0_78 = arith.constant 0 : index
    %c0_79 = arith.constant 0 : index
    %93 = vector.load %arg14[%c0_78, %c0_79] : memref<384x128xbf16, #tpu.memory_space<vmem>>, vector<384x128xbf16>
    %cst_80 = arith.constant dense<0.000000e+00> : vector<8x128xf32>
    %94 = tpu.matmul %92, %93, %cst_80 {dimension_numbers = #tpu.dot_dimension_numbers<[1], [0], [0], [1], [0, 0, 1, 1], [], []>} : vector<8x384xbf16>, vector<384x128xbf16>, vector<8x128xf32> -> vector<8x128xf32>
    %c0_81 = arith.constant 0 : index
    %c0_82 = arith.constant 0 : index
    %95 = vector.load %arg15[%c0_81, %c0_82] : memref<1x128xf32, #tpu.memory_space<vmem>>, vector<1x128xf32>
    %96 = vector.broadcast %95 : vector<1x128xf32> to vector<8x128xf32>
    %97 = arith.addf %94, %96 : vector<8x128xf32>
    %cst_83 = arith.constant 0.000000e+00 : f32
    %98 = vector.broadcast %cst_83 : f32 to vector<8x128xf32>
    %99 = arith.cmpf oge, %97, %98 : vector<8x128xf32>
    %cst_84 = arith.constant 0.00999999977 : f32
    %100 = vector.broadcast %cst_84 : f32 to vector<8x128xf32>
    %101 = arith.mulf %97, %100 : vector<8x128xf32>
    %102 = arith.select %99, %97, %101 : vector<8x128xi1>, vector<8x128xf32>
    %103 = arith.truncf %102 : vector<8x128xf32> to vector<8x128xbf16>
    %c0_85 = arith.constant 0 : index
    %c0_86 = arith.constant 0 : index
    %104 = vector.load %arg16[%c0_85, %c0_86] : memref<128x128xbf16, #tpu.memory_space<vmem>>, vector<128x128xbf16>
    %cst_87 = arith.constant dense<0.000000e+00> : vector<8x128xf32>
    %105 = tpu.matmul %103, %104, %cst_87 {dimension_numbers = #tpu.dot_dimension_numbers<[1], [0], [0], [1], [0, 0, 1, 1], [], []>} : vector<8x128xbf16>, vector<128x128xbf16>, vector<8x128xf32> -> vector<8x128xf32>
    %c0_88 = arith.constant 0 : index
    %c0_89 = arith.constant 0 : index
    %106 = vector.load %arg17[%c0_88, %c0_89] : memref<1x128xf32, #tpu.memory_space<vmem>>, vector<1x128xf32>
    %107 = vector.broadcast %106 : vector<1x128xf32> to vector<8x128xf32>
    %108 = arith.addf %105, %107 : vector<8x128xf32>
    %109 = arith.addf %108, %71 : vector<8x128xf32>
    %cst_90 = arith.constant 0.000000e+00 : f32
    %110 = vector.broadcast %cst_90 : f32 to vector<8x128xf32>
    %111 = arith.cmpf oge, %109, %110 : vector<8x128xf32>
    %cst_91 = arith.constant 0.00999999977 : f32
    %112 = vector.broadcast %cst_91 : f32 to vector<8x128xf32>
    %113 = arith.mulf %109, %112 : vector<8x128xf32>
    %114 = arith.select %111, %109, %113 : vector<8x128xi1>, vector<8x128xf32>
    %cst_92 = arith.constant dense<0.000000e+00> : vector<128xf32>
    %115 = vector.multi_reduction <add>, %114, %cst_92 [0] : vector<8x128xf32> to vector<128xf32>
    %116 = vector.shape_cast %115 : vector<128xf32> to vector<1x128xf32>
    %cst_93 = arith.constant 1.250000e-01 : f32
    %117 = vector.broadcast %cst_93 : f32 to vector<1x128xf32>
    %118 = arith.mulf %116, %117 : vector<1x128xf32>
    %c0_94 = arith.constant 0 : index
    %c0_95 = arith.constant 0 : index
    %119 = vector.load %arg20[%c0_94, %c0_95] : memref<128x128xf32, #tpu.memory_space<vmem>>, vector<128x128xf32>
    %cst_96 = arith.constant dense<0.000000e+00> : vector<1x128xf32>
    %120 = tpu.matmul %118, %119, %cst_96 {dimension_numbers = #tpu.dot_dimension_numbers<[1], [0], [0], [1], [0, 0, 1, 1], [], []>} : vector<1x128xf32>, vector<128x128xf32>, vector<1x128xf32> -> vector<1x128xf32>
    %c0_97 = arith.constant 0 : index
    %c0_98 = arith.constant 0 : index
    %121 = vector.load %arg21[%c0_97, %c0_98] : memref<1x128xf32, #tpu.memory_space<vmem>>, vector<1x128xf32>
    %122 = arith.addf %120, %121 : vector<1x128xf32>
    %cst_99 = arith.constant dense<0xFF800000> : vector<1xf32>
    %123 = vector.multi_reduction <maximumf>, %122, %cst_99 [1] : vector<1x128xf32> to vector<1xf32>
    %124 = vector.shape_cast %123 : vector<1xf32> to vector<1x1xf32>
    %125 = vector.broadcast %124 : vector<1x1xf32> to vector<1x128xf32>
    %126 = arith.subf %122, %125 : vector<1x128xf32>
    %127 = math.exp %126 : vector<1x128xf32>
    %cst_100 = arith.constant dense<0.000000e+00> : vector<1xf32>
    %128 = vector.multi_reduction <add>, %127, %cst_100 [1] : vector<1x128xf32> to vector<1xf32>
    %129 = vector.shape_cast %128 : vector<1xf32> to vector<1x1xf32>
    %130 = math.log %129 : vector<1x1xf32>
    %131 = arith.addf %130, %124 : vector<1x1xf32>
    %132 = vector.broadcast %131 : vector<1x1xf32> to vector<1x128xf32>
    %133 = arith.subf %122, %132 : vector<1x128xf32>
    %134 = vector.shape_cast %133 : vector<1x128xf32> to vector<1x128xf32>
    %135 = vector.broadcast %134 : vector<1x128xf32> to vector<8x128xf32>
    %c0_101 = arith.constant 0 : index
    %c0_102 = arith.constant 0 : index
    %c0_103 = arith.constant 0 : index
    %136 = vector.load %arg22[%c0_101, %c0_102, %c0_103] : memref<1x8x128xf32, #tpu.memory_space<vmem>>, vector<1x8x128xf32>
    %137 = vector.shape_cast %136 : vector<1x8x128xf32> to vector<8x128xf32>
    %138 = vector.shape_cast %135 : vector<8x128xf32> to vector<1x8x128xf32>
    tpu.vector_store %arg22[%c0_101, %c0_102, %c0_103], %138 {strides = array<i32>} : memref<1x8x128xf32, #tpu.memory_space<vmem>>, vector<1x8x128xf32>,
    return
  }
  func.func @transform_0(%arg0: i32) -> (i32, i32, i32) {
    %c0_i32 = arith.constant 0 : i32
    %c0_i32_0 = arith.constant 0 : i32
    %c0_i32_1 = arith.constant 0 : i32
    return %arg0, %c0_i32, %c0_i32_0 : i32, i32, i32
  }
  func.func @transform_1(%arg0: i32) -> (i32, i32) {
    %c0_i32 = arith.constant 0 : i32
    %c0_i32_0 = arith.constant 0 : i32
    %c0_i32_1 = arith.constant 0 : i32
    return %c0_i32, %c0_i32_0 : i32, i32
  }
  func.func @transform_2(%arg0: i32) -> (i32, i32) {
    %c0_i32 = arith.constant 0 : i32
    %c0_i32_0 = arith.constant 0 : i32
    %c0_i32_1 = arith.constant 0 : i32
    return %c0_i32, %c0_i32_0 : i32, i32
  }
  func.func @transform_3(%arg0: i32) -> (i32, i32) {
    %c0_i32 = arith.constant 0 : i32
    %c0_i32_0 = arith.constant 0 : i32
    %c0_i32_1 = arith.constant 0 : i32
    return %c0_i32, %c0_i32_0 : i32, i32
  }
  func.func @transform_4(%arg0: i32) -> (i32, i32) {
    %c0_i32 = arith.constant 0 : i32
    %c0_i32_0 = arith.constant 0 : i32
    %c0_i32_1 = arith.constant 0 : i32
    return %c0_i32, %c0_i32_0 : i32, i32
  }
  func.func @transform_5(%arg0: i32) -> (i32, i32) {
    %c0_i32 = arith.constant 0 : i32
    %c0_i32_0 = arith.constant 0 : i32
    %c0_i32_1 = arith.constant 0 : i32
    return %c0_i32, %c0_i32_0 : i32, i32
  }
  func.func @transform_6(%arg0: i32) -> (i32, i32) {
    %c0_i32 = arith.constant 0 : i32
    %c0_i32_0 = arith.constant 0 : i32
    %c0_i32_1 = arith.constant 0 : i32
    return %c0_i32, %c0_i32_0 : i32, i32
  }
  func.func @transform_7(%arg0: i32) -> (i32, i32) {
    %c0_i32 = arith.constant 0 : i32
    %c0_i32_0 = arith.constant 0 : i32
    %c0_i32_1 = arith.constant 0 : i32
    return %c0_i32, %c0_i32_0 : i32, i32
  }
  func.func @transform_8(%arg0: i32) -> (i32, i32) {
    %c0_i32 = arith.constant 0 : i32
    %c0_i32_0 = arith.constant 0 : i32
    %c0_i32_1 = arith.constant 0 : i32
    return %c0_i32, %c0_i32_0 : i32, i32
  }
  func.func @transform_9(%arg0: i32) -> (i32, i32) {
    %c0_i32 = arith.constant 0 : i32
    %c0_i32_0 = arith.constant 0 : i32
    %c0_i32_1 = arith.constant 0 : i32
    return %c0_i32, %c0_i32_0 : i32, i32
  }
  func.func @transform_10(%arg0: i32) -> (i32, i32) {
    %c0_i32 = arith.constant 0 : i32
    %c0_i32_0 = arith.constant 0 : i32
    %c0_i32_1 = arith.constant 0 : i32
    return %c0_i32, %c0_i32_0 : i32, i32
  }
  func.func @transform_11(%arg0: i32) -> (i32, i32) {
    %c0_i32 = arith.constant 0 : i32
    %c0_i32_0 = arith.constant 0 : i32
    %c0_i32_1 = arith.constant 0 : i32
    return %c0_i32, %c0_i32_0 : i32, i32
  }
  func.func @transform_12(%arg0: i32) -> (i32, i32) {
    %c0_i32 = arith.constant 0 : i32
    %c0_i32_0 = arith.constant 0 : i32
    %c0_i32_1 = arith.constant 0 : i32
    return %c0_i32, %c0_i32_0 : i32, i32
  }
  func.func @transform_13(%arg0: i32) -> (i32, i32) {
    %c0_i32 = arith.constant 0 : i32
    %c0_i32_0 = arith.constant 0 : i32
    %c0_i32_1 = arith.constant 0 : i32
    return %c0_i32, %c0_i32_0 : i32, i32
  }
  func.func @transform_14(%arg0: i32) -> (i32, i32) {
    %c0_i32 = arith.constant 0 : i32
    %c0_i32_0 = arith.constant 0 : i32
    %c0_i32_1 = arith.constant 0 : i32
    return %c0_i32, %c0_i32_0 : i32, i32
  }
  func.func @transform_15(%arg0: i32) -> (i32, i32) {
    %c0_i32 = arith.constant 0 : i32
    %c0_i32_0 = arith.constant 0 : i32
    %c0_i32_1 = arith.constant 0 : i32
    return %c0_i32, %c0_i32_0 : i32, i32
  }
  func.func @transform_16(%arg0: i32) -> (i32, i32) {
    %c0_i32 = arith.constant 0 : i32
    %c0_i32_0 = arith.constant 0 : i32
    %c0_i32_1 = arith.constant 0 : i32
    return %c0_i32, %c0_i32_0 : i32, i32
  }
  func.func @transform_17(%arg0: i32) -> (i32, i32) {
    %c0_i32 = arith.constant 0 : i32
    %c0_i32_0 = arith.constant 0 : i32
    %c0_i32_1 = arith.constant 0 : i32
    return %c0_i32, %c0_i32_0 : i32, i32
  }
  func.func @transform_18(%arg0: i32) -> (i32, i32) {
    %c0_i32 = arith.constant 0 : i32
    %c0_i32_0 = arith.constant 0 : i32
    %c0_i32_1 = arith.constant 0 : i32
    return %c0_i32, %c0_i32_0 : i32, i32
  }
  func.func @transform_19(%arg0: i32) -> (i32, i32) {
    %c0_i32 = arith.constant 0 : i32
    %c0_i32_0 = arith.constant 0 : i32
    %c0_i32_1 = arith.constant 0 : i32
    return %c0_i32, %c0_i32_0 : i32, i32
  }
  func.func @transform_20(%arg0: i32) -> (i32, i32) {
    %c0_i32 = arith.constant 0 : i32
    %c0_i32_0 = arith.constant 0 : i32
    %c0_i32_1 = arith.constant 0 : i32
    return %c0_i32, %c0_i32_0 : i32, i32
  }
  func.func @transform_21(%arg0: i32) -> (i32, i32, i32) {
    %c0_i32 = arith.constant 0 : i32
    %c0_i32_0 = arith.constant 0 : i32
    %c0_i32_1 = arith.constant 0 : i32
    return %arg0, %c0_i32, %c0_i32_0 : i32, i32, i32
  }
}

</mosaic_0001>

<llo_original>
// kernel: tpu_custom_call.1
$region0: #{tpu_custom_call.1}
  #allocation0 [shape = 'u32[]', space=smem, size = 0x4, offset = 0x4, fixed_abs, tag = 'smem constant byte address 0x4 - core index']
  #allocation1 [shape = 'u32[144,128]{1,0:T(1,128)}', space=vmem, size = 0x12000, scoped, tag = 'internal scratch']
  #allocation2 [shape = 'f32[40,128]{1,0:T(8,128)}', space=vmem, size = 0x5000, scoped, tag = 'scratch operand']
  %s0 = inlined_call_operand.vmem [shape: f32[2,32,8], index: 0, kind: input, shape index: {}]
  %s1 = inlined_call_operand.vmem [shape: bf16[8,128], index: 1, kind: input, shape index: {}]
  %s2 = inlined_call_operand.vmem [shape: f32[1,128], index: 2, kind: input, shape index: {}]
  %s3 = inlined_call_operand.hbm [shape: bf16[128,128], index: 3, kind: input, shape index: {}]
  %s4 = inlined_call_operand.vmem [shape: f32[1,128], index: 4, kind: input, shape index: {}]
  %s5 = inlined_call_operand.hbm [shape: bf16[384,128], index: 5, kind: input, shape index: {}]
  %s6 = inlined_call_operand.vmem [shape: f32[1,128], index: 6, kind: input, shape index: {}]
  %s7 = inlined_call_operand.hbm [shape: bf16[128,128], index: 7, kind: input, shape index: {}]
  %s8 = inlined_call_operand.vmem [shape: f32[1,128], index: 8, kind: input, shape index: {}]
  %s9 = inlined_call_operand.hbm [shape: bf16[128,128], index: 9, kind: input, shape index: {}]
  %s10 = inlined_call_operand.vmem [shape: f32[1,128], index: 10, kind: input, shape index: {}]
  %s11 = inlined_call_operand.hbm [shape: bf16[128,128], index: 11, kind: input, shape index: {}]
  %s12 = inlined_call_operand.vmem [shape: f32[1,128], index: 12, kind: input, shape index: {}]
  %s13 = inlined_call_operand.hbm [shape: bf16[384,128], index: 13, kind: input, shape index: {}]
  %s14 = inlined_call_operand.vmem [shape: f32[1,128], index: 14, kind: input, shape index: {}]
  %s15 = inlined_call_operand.hbm [shape: bf16[128,128], index: 15, kind: input, shape index: {}]
  %s16 = inlined_call_operand.vmem [shape: f32[1,128], index: 16, kind: input, shape index: {}]
  %s17 = inlined_call_operand.hbm [shape: bf16[128,128], index: 17, kind: input, shape index: {}]
  %s18 = inlined_call_operand.vmem [shape: f32[1,128], index: 18, kind: input, shape index: {}]
  %s19 = inlined_call_operand.vmem [shape: f32[128,128], index: 19, kind: input, shape index: {}]
  %s20 = inlined_call_operand.vmem [shape: f32[1,128], index: 20, kind: input, shape index: {}]
  %s21 = inlined_call_operand.hbm [shape: f32[2,8,128], index: 21, kind: output, shape index: {}]
  %s22 = sld [smem:[#allocation0]]
  $region149: #{tpu_custom_call.1} parent=0
    _
  %s24 = ssub.s32 1, %s22
  %s25 = scalar_select 0, %s24, %s22
  $region1: #{tpu_custom_call.1} parent=0
    #allocation3 [shape = 'u8[32768]{0}', space=vmem, size = 0x8000, scoped, tag = 'input window, operand 3, single buffered']
    #allocation4 [shape = 's32[2]{0}', space=sflag, size = 0x8, scoped, tag = 'scoped memory for tpu_custom_call.1']
    #allocation5 [shape = 's32[2]{0}', space=sflag, size = 0x8, scoped, tag = 'scoped memory for tpu_custom_call.1']
    #allocation6 [shape = 'u8[98304]{0}', space=vmem, size = 0x18000, scoped, tag = 'input window, operand 5, single buffered']
    #allocation7 [shape = 's32[1]{0}', space=sflag, size = 0x4, scoped, tag = 'scoped memory for tpu_custom_call.1']
    #allocation8 [shape = 'u8[32768]{0}', space=vmem, size = 0x8000, scoped, tag = 'input window, operand 7, single buffered']
    #allocation9 [shape = 'u8[32768]{0}', space=vmem, size = 0x8000, scoped, tag = 'input window, operand 9, single buffered']
    #allocation10 [shape = 's32[1]{0}', space=sflag, size = 0x4, scoped, tag = 'scoped memory for tpu_custom_call.1']
    #allocation11 [shape = 'u8[32768]{0}', space=vmem, size = 0x8000, scoped, tag = 'input window, operand 11, single buffered']
    #allocation12 [shape = 'u8[98304]{0}', space=vmem, size = 0x18000, scoped, tag = 'input window, operand 13, single buffered']
    #allocation13 [shape = 's32[1]{0}', space=sflag, size = 0x4, scoped, tag = 'scoped memory for tpu_custom_call.1']
    #allocation14 [shape = 'u8[32768]{0}', space=vmem, size = 0x8000, scoped, tag = 'input window, operand 15, single buffered']
    #allocation15 [shape = 'u8[32768]{0}', space=vmem, size = 0x8000, scoped, tag = 'input window, operand 17, single buffered']
    #allocation16 [shape = 's32[1]{0}', space=sflag, size = 0x4, scoped, tag = 'scoped memory for tpu_custom_call.1']
    #allocation17 [shape = 'u8[8192]{0}', space=vmem, size = 0x2000, scoped, tag = 'output window, operand 0']
    %26 = vsyncpa [#allocation4], 0
    %27 = vsyncpa [#allocation7], 0
    %28 = vsyncpa [#allocation10], 0
    %29 = vsyncpa [#allocation13], 0
    %30 = vsyncpa [#allocation16], 0
    %31 = vsyncpa [#allocation5], 0
    %s32 = scalar_lea.sflag [#allocation5], 1
    %33 = vsyncpa %s32, 0
    loop: start=0, step=1, limit=4
    $region2: #{tpu_custom_call.1} parent=1 // loop_pre_header
      _
    $region3: #{tpu_custom_call.1} parent=1 // loop_header
      %s35 = sphi 0, %s39
      %p36 = scmp.ge.s32.totalorder %s35, 4
      %s45 = sphi 0, %s47
      %s48 = sphi 0, %s45
      %s49 = sphi 0, %s48
      %s65 = sphi 0, %s49
      %s69 = sphi 0, %s69
      %s71 = sphi 0, %s69
      %s72 = sphi 0, %s71
      %s86 = sphi 0, %s72
      %s90 = sphi 0, %s90
      %s92 = sphi 0, %s90
      %s93 = sphi 0, %s92
      %s107 = sphi 0, %s93
      %s111 = sphi 0, %s111
      %s113 = sphi 0, %s111
      %s114 = sphi 0, %s113
      %s128 = sphi 0, %s114
      %s132 = sphi 0, %s132
      %s134 = sphi 0, %s132
      %s135 = sphi 0, %s134
      %s149 = sphi 0, %s135
      %s153 = sphi 0, %s153
      %s155 = sphi 0, %s153
      %s156 = sphi 0, %s155
      %s170 = sphi 0, %s156
      %s174 = sphi 0, %s174
      %s176 = sphi 0, %s174
      %s177 = sphi 0, %s176
      %s191 = sphi 0, %s177
      %s195 = sphi 0, %s195
      %s197 = sphi 0, %s195
      %s198 = sphi 0, %s197
      %s212 = sphi 0, %s198
      %s216 = sphi 0, %s216
      %s218 = sphi 0, %s216
      %s219 = sphi 0, %s218
      %s233 = sphi 0, %s219
      %s237 = sphi 0, %s237
      %s239 = sphi 0, %s237
      %s240 = sphi 0, %s239
      %s254 = sphi 0, %s240
      %s258 = sphi 0, %s258
      %s260 = sphi 0, %s258
      %s261 = sphi 0, %s260
      %s275 = sphi 0, %s261
      %s279 = sphi 0, %s279
      %s281 = sphi 0, %s279
      %s282 = sphi 0, %s281
      %s296 = sphi 0, %s282
      %s300 = sphi 0, %s300
      %s302 = sphi 0, %s300
      %s303 = sphi 0, %s302
      %s317 = sphi 0, %s303
      %s321 = sphi 0, %s321
      %s323 = sphi 0, %s321
      %s324 = sphi 0, %s323
      %s338 = sphi 0, %s324
      %s342 = sphi 0, %s342
      %s344 = sphi 0, %s342
      %s345 = sphi 0, %s344
      %s359 = sphi 0, %s345
      %s363 = sphi 0, %s363
      %s365 = sphi 0, %s363
      %s366 = sphi 0, %s365
      %s380 = sphi 0, %s366
      %s384 = sphi 0, %s384
      %s386 = sphi 0, %s384
      %s387 = sphi 0, %s386
      %s401 = sphi 0, %s387
      %s405 = sphi 0, %s405
      %s407 = sphi 0, %s405
      %s408 = sphi 0, %s407
      %s422 = sphi 0, %s408
      %s426 = sphi 0, %s426
      %s428 = sphi 0, %s426
      %s429 = sphi 0, %s428
      %s443 = sphi 0, %s429
      %s447 = sphi 0, %s447
      %s449 = sphi 0, %s447
      %s450 = sphi 0, %s449
      %s464 = sphi 0, %s450
      %s468 = sphi 0, %s468
      %s470 = sphi 0, %s468
      %s471 = sphi 0, %s470
      %s485 = sphi 0, %s471
      %s491 = sphi 0, %s493
      %s494 = sphi 0, %s491
      %s495 = sphi 0, %s494
      %s511 = sphi 0, %s495
    $region4: #{tpu_custom_call.1} parent=1 // loop_header_branch
      %38 = sbr.rel (%p36) target = $region8
    $region5: #{tpu_custom_call.1} parent=1 // loop_body
      %s40 = ssub.s32 %s35, 1
      %s41 = ssub.s32 %s35, 2
      %s42 = sadd.s32 %s35, 1
      %s43 = ssub.s32 %s35, %s42
      %p44 = scmp.eq.s32.totalorder %s43, 0
      %s46 = sadd.s32 %s45, 1
      %s47 = scalar_select %p44, %s45, %s46
      %p50 = pneg %p44
      %p51 = scmp.eq.s32.totalorder %s35, 1
      %p52 = por %p50, %p51
      %p53 = scmp.ne.s32.totalorder %s45, %s48
      %p54 = scmp.eq.s32.totalorder %s35, 0
      %p55 = por %p53, %p54
      %p56 = scmp.ne.s32.totalorder %s45, %s48
      %p57 = scmp.eq.s32.totalorder %s40, 1
      %p58 = por %p56, %p57
      %p59 = scmp.ne.s32.totalorder %s48, %s49
      %p60 = scmp.eq.s32.totalorder %s40, 0
      %p61 = por %p59, %p60
      %p62 = scmp.ne.s32.totalorder %s48, %s49
      %p63 = scmp.eq.s32.totalorder %s41, 1
      %p64 = por %p62, %p63
      %p66 = scmp.ne.s32.totalorder %s49, %s65
      %p67 = scmp.eq.s32.totalorder %s41, 0
      %p68 = por %p66, %p67
      %s70 = sadd.s32 %s69, 1
      %p73 = scmp.eq.s32.totalorder %s35, 1
      %p74 = scmp.ne.s32.totalorder %s69, %s71
      %p75 = scmp.eq.s32.totalorder %s35, 0
      %p76 = por %p74, %p75
      %p77 = scmp.ne.s32.totalorder %s69, %s71
      %p78 = scmp.eq.s32.totalorder %s40, 1
      %p79 = por %p77, %p78
      %p80 = scmp.ne.s32.totalorder %s71, %s72
      %p81 = scmp.eq.s32.totalorder %s40, 0
      %p82 = por %p80, %p81
      %p83 = scmp.ne.s32.totalorder %s71, %s72
      %p84 = scmp.eq.s32.totalorder %s41, 1
      %p85 = por %p83, %p84
      %p87 = scmp.ne.s32.totalorder %s72, %s86
      %p88 = scmp.eq.s32.totalorder %s41, 0
      %p89 = por %p87, %p88
      %s91 = sadd.s32 %s90, 1
      %p94 = scmp.eq.s32.totalorder %s35, 1
      %p95 = scmp.ne.s32.totalorder %s90, %s92
      %p96 = scmp.eq.s32.totalorder %s35, 0
      %p97 = por %p95, %p96
      %p98 = scmp.ne.s32.totalorder %s90, %s92
      %p99 = scmp.eq.s32.totalorder %s40, 1
      %p100 = por %p98, %p99
      %p101 = scmp.ne.s32.totalorder %s92, %s93
      %p102 = scmp.eq.s32.totalorder %s40, 0
      %p103 = por %p101, %p102
      %p104 = scmp.ne.s32.totalorder %s92, %s93
      %p105 = scmp.eq.s32.totalorder %s41, 1
      %p106 = por %p104, %p105
      %p108 = scmp.ne.s32.totalorder %s93, %s107
      %p109 = scmp.eq.s32.totalorder %s41, 0
      %p110 = por %p108, %p109
      %s112 = sadd.s32 %s111, 1
      %p115 = scmp.eq.s32.totalorder %s35, 1
      %p116 = scmp.ne.s32.totalorder %s111, %s113
      %p117 = scmp.eq.s32.totalorder %s35, 0
      %p118 = por %p116, %p117
      %p119 = scmp.ne.s32.totalorder %s111, %s113
      %p120 = scmp.eq.s32.totalorder %s40, 1
      %p121 = por %p119, %p120
      %p122 = scmp.ne.s32.totalorder %s113, %s114
      %p123 = scmp.eq.s32.totalorder %s40, 0
      %p124 = por %p122, %p123
      %p125 = scmp.ne.s32.totalorder %s113, %s114
      %p126 = scmp.eq.s32.totalorder %s41, 1
      %p127 = por %p125, %p126
      %p129 = scmp.ne.s32.totalorder %s114, %s128
      %p130 = scmp.eq.s32.totalorder %s41, 0
      %p131 = por %p129, %p130
      %s133 = sadd.s32 %s132, 1
      %p136 = scmp.eq.s32.totalorder %s35, 1
      %p137 = scmp.ne.s32.totalorder %s132, %s134
      %p138 = scmp.eq.s32.totalorder %s35, 0
      %p139 = por %p137, %p138
      %p140 = scmp.ne.s32.totalorder %s132, %s134
      %p141 = scmp.eq.s32.totalorder %s40, 1
      %p142 = por %p140, %p141
      %p143 = scmp.ne.s32.totalorder %s134, %s135
      %p144 = scmp.eq.s32.totalorder %s40, 0
      %p145 = por %p143, %p144
      %p146 = scmp.ne.s32.totalorder %s134, %s135
      %p147 = scmp.eq.s32.totalorder %s41, 1
      %p148 = por %p146, %p147
      %p150 = scmp.ne.s32.totalorder %s135, %s149
      %p151 = scmp.eq.s32.totalorder %s41, 0
      %p152 = por %p150, %p151
      %s154 = sadd.s32 %s153, 1
      %p157 = scmp.eq.s32.totalorder %s35, 1
      %p158 = scmp.ne.s32.totalorder %s153, %s155
      %p159 = scmp.eq.s32.totalorder %s35, 0
      %p160 = por %p158, %p159
      %p161 = scmp.ne.s32.totalorder %s153, %s155
      %p162 = scmp.eq.s32.totalorder %s40, 1
      %p163 = por %p161, %p162
      %p164 = scmp.ne.s32.totalorder %s155, %s156
      %p165 = scmp.eq.s32.totalorder %s40, 0
      %p166 = por %p164, %p165
      %p167 = scmp.ne.s32.totalorder %s155, %s156
      %p168 = scmp.eq.s32.totalorder %s41, 1
      %p169 = por %p167, %p168
      %p171 = scmp.ne.s32.totalorder %s156, %s170
      %p172 = scmp.eq.s32.totalorder %s41, 0
      %p173 = por %p171, %p172
      %s175 = sadd.s32 %s174, 1
      %p178 = scmp.eq.s32.totalorder %s35, 1
      %p179 = scmp.ne.s32.totalorder %s174, %s176
      %p180 = scmp.eq.s32.totalorder %s35, 0
      %p181 = por %p179, %p180
      %p182 = scmp.ne.s32.totalorder %s174, %s176
      %p183 = scmp.eq.s32.totalorder %s40, 1
      %p184 = por %p182, %p183
      %p185 = scmp.ne.s32.totalorder %s176, %s177
      %p186 = scmp.eq.s32.totalorder %s40, 0
      %p187 = por %p185, %p186
      %p188 = scmp.ne.s32.totalorder %s176, %s177
      %p189 = scmp.eq.s32.totalorder %s41, 1
      %p190 = por %p188, %p189
      %p192 = scmp.ne.s32.totalorder %s177, %s191
      %p193 = scmp.eq.s32.totalorder %s41, 0
      %p194 = por %p192, %p193
      %s196 = sadd.s32 %s195, 1
      %p199 = scmp.eq.s32.totalorder %s35, 1
      %p200 = scmp.ne.s32.totalorder %s195, %s197
      %p201 = scmp.eq.s32.totalorder %s35, 0
      %p202 = por %p200, %p201
      %p203 = scmp.ne.s32.totalorder %s195, %s197
      %p204 = scmp.eq.s32.totalorder %s40, 1
      %p205 = por %p203, %p204
      %p206 = scmp.ne.s32.totalorder %s197, %s198
      %p207 = scmp.eq.s32.totalorder %s40, 0
      %p208 = por %p206, %p207
      %p209 = scmp.ne.s32.totalorder %s197, %s198
      %p210 = scmp.eq.s32.totalorder %s41, 1
      %p211 = por %p209, %p210
      %p213 = scmp.ne.s32.totalorder %s198, %s212
      %p214 = scmp.eq.s32.totalorder %s41, 0
      %p215 = por %p213, %p214
      %s217 = sadd.s32 %s216, 1
      %p220 = scmp.eq.s32.totalorder %s35, 1
      %p221 = scmp.ne.s32.totalorder %s216, %s218
      %p222 = scmp.eq.s32.totalorder %s35, 0
      %p223 = por %p221, %p222
      %p224 = scmp.ne.s32.totalorder %s216, %s218
      %p225 = scmp.eq.s32.totalorder %s40, 1
      %p226 = por %p224, %p225
      %p227 = scmp.ne.s32.totalorder %s218, %s219
      %p228 = scmp.eq.s32.totalorder %s40, 0
      %p229 = por %p227, %p228
      %p230 = scmp.ne.s32.totalorder %s218, %s219
      %p231 = scmp.eq.s32.totalorder %s41, 1
      %p232 = por %p230, %p231
      %p234 = scmp.ne.s32.totalorder %s219, %s233
      %p235 = scmp.eq.s32.totalorder %s41, 0
      %p236 = por %p234, %p235
      %s238 = sadd.s32 %s237, 1
      %p241 = scmp.eq.s32.totalorder %s35, 1
      %p242 = scmp.ne.s32.totalorder %s237, %s239
      %p243 = scmp.eq.s32.totalorder %s35, 0
      %p244 = por %p242, %p243
      %p245 = scmp.ne.s32.totalorder %s237, %s239
      %p246 = scmp.eq.s32.totalorder %s40, 1
      %p247 = por %p245, %p246
      %p248 = scmp.ne.s32.totalorder %s239, %s240
      %p249 = scmp.eq.s32.totalorder %s40, 0
      %p250 = por %p248, %p249
      %p251 = scmp.ne.s32.totalorder %s239, %s240
      %p252 = scmp.eq.s32.totalorder %s41, 1
      %p253 = por %p251, %p252
      %p255 = scmp.ne.s32.totalorder %s240, %s254
      %p256 = scmp.eq.s32.totalorder %s41, 0
      %p257 = por %p255, %p256
      %s259 = sadd.s32 %s258, 1
      %p262 = scmp.eq.s32.totalorder %s35, 1
      %p263 = scmp.ne.s32.totalorder %s258, %s260
      %p264 = scmp.eq.s32.totalorder %s35, 0
      %p265 = por %p263, %p264
      %p266 = scmp.ne.s32.totalorder %s258, %s260
      %p267 = scmp.eq.s32.totalorder %s40, 1
      %p268 = por %p266, %p267
      %p269 = scmp.ne.s32.totalorder %s260, %s261
      %p270 = scmp.eq.s32.totalorder %s40, 0
      %p271 = por %p269, %p270
      %p272 = scmp.ne.s32.totalorder %s260, %s261
      %p273 = scmp.eq.s32.totalorder %s41, 1
      %p274 = por %p272, %p273
      %p276 = scmp.ne.s32.totalorder %s261, %s275
      %p277 = scmp.eq.s32.totalorder %s41, 0
      %p278 = por %p276, %p277
      %s280 = sadd.s32 %s279, 1
      %p283 = scmp.eq.s32.totalorder %s35, 1
      %p284 = scmp.ne.s32.totalorder %s279, %s281
      %p285 = scmp.eq.s32.totalorder %s35, 0
      %p286 = por %p284, %p285
      %p287 = scmp.ne.s32.totalorder %s279, %s281
      %p288 = scmp.eq.s32.totalorder %s40, 1
      %p289 = por %p287, %p288
      %p290 = scmp.ne.s32.totalorder %s281, %s282
      %p291 = scmp.eq.s32.totalorder %s40, 0
      %p292 = por %p290, %p291
      %p293 = scmp.ne.s32.totalorder %s281, %s282
      %p294 = scmp.eq.s32.totalorder %s41, 1
      %p295 = por %p293, %p294
      %p297 = scmp.ne.s32.totalorder %s282, %s296
      %p298 = scmp.eq.s32.totalorder %s41, 0
      %p299 = por %p297, %p298
      %s301 = sadd.s32 %s300, 1
      %p304 = scmp.eq.s32.totalorder %s35, 1
      %p305 = scmp.ne.s32.totalorder %s300, %s302
      %p306 = scmp.eq.s32.totalorder %s35, 0
      %p307 = por %p305, %p306
      %p308 = scmp.ne.s32.totalorder %s300, %s302
      %p309 = scmp.eq.s32.totalorder %s40, 1
      %p310 = por %p308, %p309
      %p311 = scmp.ne.s32.totalorder %s302, %s303
      %p312 = scmp.eq.s32.totalorder %s40, 0
      %p313 = por %p311, %p312
      %p314 = scmp.ne.s32.totalorder %s302, %s303
      %p315 = scmp.eq.s32.totalorder %s41, 1
      %p316 = por %p314, %p315
      %p318 = scmp.ne.s32.totalorder %s303, %s317
      %p319 = scmp.eq.s32.totalorder %s41, 0
      %p320 = por %p318, %p319
      %s322 = sadd.s32 %s321, 1
      %p325 = scmp.eq.s32.totalorder %s35, 1
      %p326 = scmp.ne.s32.totalorder %s321, %s323
      %p327 = scmp.eq.s32.totalorder %s35, 0
      %p328 = por %p326, %p327
      %p329 = scmp.ne.s32.totalorder %s321, %s323
      %p330 = scmp.eq.s32.totalorder %s40, 1
      %p331 = por %p329, %p330
      %p332 = scmp.ne.s32.totalorder %s323, %s324
      %p333 = scmp.eq.s32.totalorder %s40, 0
      %p334 = por %p332, %p333
      %p335 = scmp.ne.s32.totalorder %s323, %s324
      %p336 = scmp.eq.s32.totalorder %s41, 1
      %p337 = por %p335, %p336
      %p339 = scmp.ne.s32.totalorder %s324, %s338
      %p340 = scmp.eq.s32.totalorder %s41, 0
      %p341 = por %p339, %p340
      %s343 = sadd.s32 %s342, 1
      %p346 = scmp.eq.s32.totalorder %s35, 1
      %p347 = scmp.ne.s32.totalorder %s342, %s344
      %p348 = scmp.eq.s32.totalorder %s35, 0
      %p349 = por %p347, %p348
      %p350 = scmp.ne.s32.totalorder %s342, %s344
      %p351 = scmp.eq.s32.totalorder %s40, 1
      %p352 = por %p350, %p351
      %p353 = scmp.ne.s32.totalorder %s344, %s345
      %p354 = scmp.eq.s32.totalorder %s40, 0
      %p355 = por %p353, %p354
      %p356 = scmp.ne.s32.totalorder %s344, %s345
      %p357 = scmp.eq.s32.totalorder %s41, 1
      %p358 = por %p356, %p357
      %p360 = scmp.ne.s32.totalorder %s345, %s359
      %p361 = scmp.eq.s32.totalorder %s41, 0
      %p362 = por %p360, %p361
      %s364 = sadd.s32 %s363, 1
      %p367 = scmp.eq.s32.totalorder %s35, 1
      %p368 = scmp.ne.s32.totalorder %s363, %s365
      %p369 = scmp.eq.s32.totalorder %s35, 0
      %p370 = por %p368, %p369
      %p371 = scmp.ne.s32.totalorder %s363, %s365
      %p372 = scmp.eq.s32.totalorder %s40, 1
      %p373 = por %p371, %p372
      %p374 = scmp.ne.s32.totalorder %s365, %s366
      %p375 = scmp.eq.s32.totalorder %s40, 0
      %p376 = por %p374, %p375
      %p377 = scmp.ne.s32.totalorder %s365, %s366
      %p378 = scmp.eq.s32.totalorder %s41, 1
      %p379 = por %p377, %p378
      %p381 = scmp.ne.s32.totalorder %s366, %s380
      %p382 = scmp.eq.s32.totalorder %s41, 0
      %p383 = por %p381, %p382
      %s385 = sadd.s32 %s384, 1
      %p388 = scmp.eq.s32.totalorder %s35, 1
      %p389 = scmp.ne.s32.totalorder %s384, %s386
      %p390 = scmp.eq.s32.totalorder %s35, 0
      %p391 = por %p389, %p390
      %p392 = scmp.ne.s32.totalorder %s384, %s386
      %p393 = scmp.eq.s32.totalorder %s40, 1
      %p394 = por %p392, %p393
      %p395 = scmp.ne.s32.totalorder %s386, %s387
      %p396 = scmp.eq.s32.totalorder %s40, 0
      %p397 = por %p395, %p396
      %p398 = scmp.ne.s32.totalorder %s386, %s387
      %p399 = scmp.eq.s32.totalorder %s41, 1
      %p400 = por %p398, %p399
      %p402 = scmp.ne.s32.totalorder %s387, %s401
      %p403 = scmp.eq.s32.totalorder %s41, 0
      %p404 = por %p402, %p403
      %s406 = sadd.s32 %s405, 1
      %p409 = scmp.eq.s32.totalorder %s35, 1
      %p410 = scmp.ne.s32.totalorder %s405, %s407
      %p411 = scmp.eq.s32.totalorder %s35, 0
      %p412 = por %p410, %p411
      %p413 = scmp.ne.s32.totalorder %s405, %s407
      %p414 = scmp.eq.s32.totalorder %s40, 1
      %p415 = por %p413, %p414
      %p416 = scmp.ne.s32.totalorder %s407, %s408
      %p417 = scmp.eq.s32.totalorder %s40, 0
      %p418 = por %p416, %p417
      %p419 = scmp.ne.s32.totalorder %s407, %s408
      %p420 = scmp.eq.s32.totalorder %s41, 1
      %p421 = por %p419, %p420
      %p423 = scmp.ne.s32.totalorder %s408, %s422
      %p424 = scmp.eq.s32.totalorder %s41, 0
      %p425 = por %p423, %p424
      %s427 = sadd.s32 %s426, 1
      %p430 = scmp.eq.s32.totalorder %s35, 1
      %p431 = scmp.ne.s32.totalorder %s426, %s428
      %p432 = scmp.eq.s32.totalorder %s35, 0
      %p433 = por %p431, %p432
      %p434 = scmp.ne.s32.totalorder %s426, %s428
      %p435 = scmp.eq.s32.totalorder %s40, 1
      %p436 = por %p434, %p435
      %p437 = scmp.ne.s32.totalorder %s428, %s429
      %p438 = scmp.eq.s32.totalorder %s40, 0
      %p439 = por %p437, %p438
      %p440 = scmp.ne.s32.totalorder %s428, %s429
      %p441 = scmp.eq.s32.totalorder %s41, 1
      %p442 = por %p440, %p441
      %p444 = scmp.ne.s32.totalorder %s429, %s443
      %p445 = scmp.eq.s32.totalorder %s41, 0
      %p446 = por %p444, %p445
      %s448 = sadd.s32 %s447, 1
      %p451 = scmp.eq.s32.totalorder %s35, 1
      %p452 = scmp.ne.s32.totalorder %s447, %s449
      %p453 = scmp.eq.s32.totalorder %s35, 0
      %p454 = por %p452, %p453
      %p455 = scmp.ne.s32.totalorder %s447, %s449
      %p456 = scmp.eq.s32.totalorder %s40, 1
      %p457 = por %p455, %p456
      %p458 = scmp.ne.s32.totalorder %s449, %s450
      %p459 = scmp.eq.s32.totalorder %s40, 0
      %p460 = por %p458, %p459
      %p461 = scmp.ne.s32.totalorder %s449, %s450
      %p462 = scmp.eq.s32.totalorder %s41, 1
      %p463 = por %p461, %p462
      %p465 = scmp.ne.s32.totalorder %s450, %s464
      %p466 = scmp.eq.s32.totalorder %s41, 0
      %p467 = por %p465, %p466
      %s469 = sadd.s32 %s468, 1
      %p472 = scmp.eq.s32.totalorder %s35, 1
      %p473 = scmp.ne.s32.totalorder %s468, %s470
      %p474 = scmp.eq.s32.totalorder %s35, 0
      %p475 = por %p473, %p474
      %p476 = scmp.ne.s32.totalorder %s468, %s470
      %p477 = scmp.eq.s32.totalorder %s40, 1
      %p478 = por %p476, %p477
      %p479 = scmp.ne.s32.totalorder %s470, %s471
      %p480 = scmp.eq.s32.totalorder %s40, 0
      %p481 = por %p479, %p480
      %p482 = scmp.ne.s32.totalorder %s470, %s471
      %p483 = scmp.eq.s32.totalorder %s41, 1
      %p484 = por %p482, %p483
      %p486 = scmp.ne.s32.totalorder %s471, %s485
      %p487 = scmp.eq.s32.totalorder %s41, 0
      %p488 = por %p486, %p487
      %s489 = ssub.s32 %s35, %s42
      %p490 = scmp.eq.s32.totalorder %s489, 0
      %s492 = sadd.s32 %s491, 1
      %s493 = scalar_select %p490, %s491, %s492
      %p496 = pneg %p490
      %p497 = scmp.eq.s32.totalorder %s35, 1
      %p498 = por %p496, %p497
      %p499 = scmp.ne.s32.totalorder %s491, %s494
      %p500 = scmp.eq.s32.totalorder %s35, 0
      %p501 = por %p499, %p500
      %p502 = scmp.ne.s32.totalorder %s491, %s494
      %p503 = scmp.eq.s32.totalorder %s40, 1
      %p504 = por %p502, %p503
      %p505 = scmp.ne.s32.totalorder %s494, %s495
      %p506 = scmp.eq.s32.totalorder %s40, 0
      %p507 = por %p505, %p506
      %p508 = scmp.ne.s32.totalorder %s494, %s495
      %p509 = scmp.eq.s32.totalorder %s41, 1
      %p510 = por %p508, %p509
      %p512 = scmp.ne.s32.totalorder %s495, %s511
      %p513 = scmp.eq.s32.totalorder %s41, 0
      %p514 = por %p512, %p513
      %p515 = scmp.le.s32.totalorder 1, %s35
      %p516 = scmp.lt.s32.totalorder %s35, 3
      %p517 = pnand %p515, %p516
      %p518 = pneg %p517
      // Predicated region
      $region9: #{tpu_custom_call.1} parent=5 // pred_check
        _
      $region10: #{tpu_custom_call.1} parent=5 // pred_check_branch
        %520 = sbr.rel (%p517) target = $region12
      $region11: #{tpu_custom_call.1} parent=5 // pred_region
        %s521 = ssub.s32 %s35, 1
        // Predicated region
        $region13: #{tpu_custom_call.1} parent=11 // pred_check
          %p522 = pneg %p82
        $region14: #{tpu_custom_call.1} parent=11 // pred_check_branch
          %524 = sbr.rel (%p522) target = $region16
        $region15: #{tpu_custom_call.1} parent=11 // pred_region
          _
        $region16: #{tpu_custom_call.1} parent=11 // pred_fallthru
          _
        // Predicated region
        $region17: #{tpu_custom_call.1} parent=11 // pred_check
          %p525 = pneg %p103
        $region18: #{tpu_custom_call.1} parent=11 // pred_check_branch
          %527 = sbr.rel (%p525) target = $region20
        $region19: #{tpu_custom_call.1} parent=11 // pred_region
          _
        $region20: #{tpu_custom_call.1} parent=11 // pred_fallthru
          _
        // Predicated region
        $region21: #{tpu_custom_call.1} parent=11 // pred_check
          %p528 = pneg %p124
        $region22: #{tpu_custom_call.1} parent=11 // pred_check_branch
          %530 = sbr.rel (%p528) target = $region24
        $region23: #{tpu_custom_call.1} parent=11 // pred_region
          %s532 = ssub.s32 1024, 1024
          %533 = vsyncadd [#allocation4], %s532
          %s534 = sshll.u32 [#allocation3], 4
          %s535 = int_to_ptr.vmem [resolvable:$true] %s534
          %540 = dma.hbm_to_vmem [thread:$0]  %s3, 1024, %s535, [#allocation4], 64, 64, 4
        $region24: #{tpu_custom_call.1} parent=11 // pred_fallthru
          _
        // Predicated region
        $region25: #{tpu_custom_call.1} parent=11 // pred_check
          %p541 = pneg %p145
        $region26: #{tpu_custom_call.1} parent=11 // pred_check_branch
          %543 = sbr.rel (%p541) target = $region28
        $region27: #{tpu_custom_call.1} parent=11 // pred_region
          _
        $region28: #{tpu_custom_call.1} parent=11 // pred_fallthru
          _
        // Predicated region
        $region29: #{tpu_custom_call.1} parent=11 // pred_check
          %p544 = pneg %p166
        $region30: #{tpu_custom_call.1} parent=11 // pred_check_branch
          %546 = sbr.rel (%p544) target = $region32
        $region31: #{tpu_custom_call.1} parent=11 // pred_region
          %s548 = ssub.s32 3072, 3072
          %549 = vsyncadd [#allocation7], %s548
          %s550 = sshll.u32 [#allocation6], 4
          %s551 = int_to_ptr.vmem [resolvable:$true] %s550
          %556 = dma.hbm_to_vmem [thread:$0]  %s5, 3072, %s551, [#allocation7], 64, 64, 4
        $region32: #{tpu_custom_call.1} parent=11 // pred_fallthru
          _
        // Predicated region
        $region33: #{tpu_custom_call.1} parent=11 // pred_check
          %p557 = pneg %p187
        $region34: #{tpu_custom_call.1} parent=11 // pred_check_branch
          %559 = sbr.rel (%p557) target = $region36
        $region35: #{tpu_custom_call.1} parent=11 // pred_region
          _
        $region36: #{tpu_custom_call.1} parent=11 // pred_fallthru
          _
        // Predicated region
        $region37: #{tpu_custom_call.1} parent=11 // pred_check
          %p560 = pneg %p208
        $region38: #{tpu_custom_call.1} parent=11 // pred_check_branch
          %562 = sbr.rel (%p560) target = $region40
        $region39: #{tpu_custom_call.1} parent=11 // pred_region
          %s564 = ssub.s32 1024, 1024
          %565 = vsyncadd [#allocation7], %s564
          %s566 = sshll.u32 [#allocation8], 4
          %s567 = int_to_ptr.vmem [resolvable:$true] %s566
          %572 = dma.hbm_to_vmem [thread:$0]  %s7, 1024, %s567, [#allocation7], 64, 64, 4
        $region40: #{tpu_custom_call.1} parent=11 // pred_fallthru
          _
        // Predicated region
        $region41: #{tpu_custom_call.1} parent=11 // pred_check
          %p573 = pneg %p229
        $region42: #{tpu_custom_call.1} parent=11 // pred_check_branch
          %575 = sbr.rel (%p573) target = $region44
        $region43: #{tpu_custom_call.1} parent=11 // pred_region
          _
        $region44: #{tpu_custom_call.1} parent=11 // pred_fallthru
          _
        // Predicated region
        $region45: #{tpu_custom_call.1} parent=11 // pred_check
          %p576 = pneg %p250
        $region46: #{tpu_custom_call.1} parent=11 // pred_check_branch
          %578 = sbr.rel (%p576) target = $region48
        $region47: #{tpu_custom_call.1} parent=11 // pred_region
          %s580 = ssub.s32 1024, 1024
          %581 = vsyncadd [#allocation10], %s580
          %s582 = sshll.u32 [#allocation9], 4
          %s583 = int_to_ptr.vmem [resolvable:$true] %s582
          %588 = dma.hbm_to_vmem [thread:$0]  %s9, 1024, %s583, [#allocation10], 64, 64, 4
        $region48: #{tpu_custom_call.1} parent=11 // pred_fallthru
          _
        // Predicated region
        $region49: #{tpu_custom_call.1} parent=11 // pred_check
          %p589 = pneg %p271
        $region50: #{tpu_custom_call.1} parent=11 // pred_check_branch
          %591 = sbr.rel (%p589) target = $region52
        $region51: #{tpu_custom_call.1} parent=11 // pred_region
          _
        $region52: #{tpu_custom_call.1} parent=11 // pred_fallthru
          _
        // Predicated region
        $region53: #{tpu_custom_call.1} parent=11 // pred_check
          %p592 = pneg %p292
        $region54: #{tpu_custom_call.1} parent=11 // pred_check_branch
          %594 = sbr.rel (%p592) target = $region56
        $region55: #{tpu_custom_call.1} parent=11 // pred_region
          %s596 = ssub.s32 1024, 1024
          %597 = vsyncadd [#allocation10], %s596
          %s598 = sshll.u32 [#allocation11], 4
          %s599 = int_to_ptr.vmem [resolvable:$true] %s598
          %604 = dma.hbm_to_vmem [thread:$0]  %s11, 1024, %s599, [#allocation10], 64, 64, 4
        $region56: #{tpu_custom_call.1} parent=11 // pred_fallthru
          _
        // Predicated region
        $region57: #{tpu_custom_call.1} parent=11 // pred_check
          %p605 = pneg %p313
        $region58: #{tpu_custom_call.1} parent=11 // pred_check_branch
          %607 = sbr.rel (%p605) target = $region60
        $region59: #{tpu_custom_call.1} parent=11 // pred_region
          _
        $region60: #{tpu_custom_call.1} parent=11 // pred_fallthru
          _
        // Predicated region
        $region61: #{tpu_custom_call.1} parent=11 // pred_check
          %p608 = pneg %p334
        $region62: #{tpu_custom_call.1} parent=11 // pred_check_branch
          %610 = sbr.rel (%p608) target = $region64
        $region63: #{tpu_custom_call.1} parent=11 // pred_region
          %s612 = ssub.s32 3072, 3072
          %613 = vsyncadd [#allocation13], %s612
          %s614 = sshll.u32 [#allocation12], 4
          %s615 = int_to_ptr.vmem [resolvable:$true] %s614
          %620 = dma.hbm_to_vmem [thread:$0]  %s13, 3072, %s615, [#allocation13], 64, 64, 4
        $region64: #{tpu_custom_call.1} parent=11 // pred_fallthru
          _
        // Predicated region
        $region65: #{tpu_custom_call.1} parent=11 // pred_check
          %p621 = pneg %p355
        $region66: #{tpu_custom_call.1} parent=11 // pred_check_branch
          %623 = sbr.rel (%p621) target = $region68
        $region67: #{tpu_custom_call.1} parent=11 // pred_region
          _
        $region68: #{tpu_custom_call.1} parent=11 // pred_fallthru
          _
        // Predicated region
        $region69: #{tpu_custom_call.1} parent=11 // pred_check
          %p624 = pneg %p376
        $region70: #{tpu_custom_call.1} parent=11 // pred_check_branch
          %626 = sbr.rel (%p624) target = $region72
        $region71: #{tpu_custom_call.1} parent=11 // pred_region
          %s628 = ssub.s32 1024, 1024
          %629 = vsyncadd [#allocation13], %s628
          %s630 = sshll.u32 [#allocation14], 4
          %s631 = int_to_ptr.vmem [resolvable:$true] %s630
          %636 = dma.hbm_to_vmem [thread:$0]  %s15, 1024, %s631, [#allocation13], 64, 64, 4
        $region72: #{tpu_custom_call.1} parent=11 // pred_fallthru
          _
        // Predicated region
        $region73: #{tpu_custom_call.1} parent=11 // pred_check
          %p637 = pneg %p397
        $region74: #{tpu_custom_call.1} parent=11 // pred_check_branch
          %639 = sbr.rel (%p637) target = $region76
        $region75: #{tpu_custom_call.1} parent=11 // pred_region
          _
        $region76: #{tpu_custom_call.1} parent=11 // pred_fallthru
          _
        // Predicated region
        $region77: #{tpu_custom_call.1} parent=11 // pred_check
          %p640 = pneg %p418
        $region78: #{tpu_custom_call.1} parent=11 // pred_check_branch
          %642 = sbr.rel (%p640) target = $region80
        $region79: #{tpu_custom_call.1} parent=11 // pred_region
          %s644 = ssub.s32 1024, 1024
          %645 = vsyncadd [#allocation16], %s644
          %s646 = sshll.u32 [#allocation15], 4
          %s647 = int_to_ptr.vmem [resolvable:$true] %s646
          %652 = dma.hbm_to_vmem [thread:$0]  %s17, 1024, %s647, [#allocation16], 64, 64, 4
        $region80: #{tpu_custom_call.1} parent=11 // pred_fallthru
          _
        // Predicated region
        $region81: #{tpu_custom_call.1} parent=11 // pred_check
          %p653 = pneg %p439
        $region82: #{tpu_custom_call.1} parent=11 // pred_check_branch
          %655 = sbr.rel (%p653) target = $region84
        $region83: #{tpu_custom_call.1} parent=11 // pred_region
          _
        $region84: #{tpu_custom_call.1} parent=11 // pred_fallthru
          _
        // Predicated region
        $region85: #{tpu_custom_call.1} parent=11 // pred_check
          %p656 = pneg %p460
        $region86: #{tpu_custom_call.1} parent=11 // pred_check_branch
          %658 = sbr.rel (%p656) target = $region88
        $region87: #{tpu_custom_call.1} parent=11 // pred_region
          _
        $region88: #{tpu_custom_call.1} parent=11 // pred_fallthru
          _
        // Predicated region
        $region89: #{tpu_custom_call.1} parent=11 // pred_check
          %p659 = pneg %p481
        $region90: #{tpu_custom_call.1} parent=11 // pred_check_branch
          %661 = sbr.rel (%p659) target = $region92
        $region91: #{tpu_custom_call.1} parent=11 // pred_region
          _
        $region92: #{tpu_custom_call.1} parent=11 // pred_fallthru
          _
      $region12: #{tpu_custom_call.1} parent=5 // pred_fallthru
        _
      %p662 = scmp.lt.s32.totalorder %s35, 2
      // Predicated region
      $region93: #{tpu_custom_call.1} parent=5 // pred_check
        %p663 = pneg %p662
      $region94: #{tpu_custom_call.1} parent=5 // pred_check_branch
        %665 = sbr.rel (%p663) target = $region96
      $region95: #{tpu_custom_call.1} parent=5 // pred_region
        // Predicated region
        $region97: #{tpu_custom_call.1} parent=95 // pred_check
          %p666 = pneg %p55
        $region98: #{tpu_custom_call.1} parent=95 // pred_check_branch
          %668 = sbr.rel (%p666) target = $region100
        $region99: #{tpu_custom_call.1} parent=95 // pred_region
          %p669 = scmp.lt.s32.totalorder %s35, 1
          %s670 = scalar_select %p669, %s35, 1
          %s671 = smul.addr %s670, 4
          %s672 = smul.addr %s671, 8
          %s673 = scalar_lea.vmem %s0, %s672
        $region100: #{tpu_custom_call.1} parent=95 // pred_fallthru
          _
      $region96: #{tpu_custom_call.1} parent=5 // pred_fallthru
        _
      %p674 = scmp.le.s32.totalorder 1, %s35
      %p675 = scmp.lt.s32.totalorder %s35, 3
      %p676 = pnand %p674, %p675
      %p677 = pneg %p676
      // Predicated region
      $region101: #{tpu_custom_call.1} parent=5 // pred_check
        _
      $region102: #{tpu_custom_call.1} parent=5 // pred_check_branch
        %679 = sbr.rel (%p676) target = $region104
      $region103: #{tpu_custom_call.1} parent=5 // pred_region
        %s680 = ssub.s32 %s35, 1
        // Predicated region
        $region105: #{tpu_custom_call.1} parent=103 // pred_check
          %p681 = pneg %p124
        $region106: #{tpu_custom_call.1} parent=103 // pred_check_branch
          %683 = sbr.rel (%p681) target = $region108
        $region107: #{tpu_custom_call.1} parent=103 // pred_region
          %684 = dma.done [#allocation4], 1024
        $region108: #{tpu_custom_call.1} parent=103 // pred_fallthru
          _
        // Predicated region
        $region109: #{tpu_custom_call.1} parent=103 // pred_check
          %p685 = pneg %p166
        $region110: #{tpu_custom_call.1} parent=103 // pred_check_branch
          %687 = sbr.rel (%p685) target = $region112
        $region111: #{tpu_custom_call.1} parent=103 // pred_region
          %688 = dma.done [#allocation7], 3072
        $region112: #{tpu_custom_call.1} parent=103 // pred_fallthru
          _
        // Predicated region
        $region113: #{tpu_custom_call.1} parent=103 // pred_check
          %p689 = pneg %p208
        $region114: #{tpu_custom_call.1} parent=103 // pred_check_branch
          %691 = sbr.rel (%p689) target = $region116
        $region115: #{tpu_custom_call.1} parent=103 // pred_region
          %692 = dma.done [#allocation7], 1024
        $region116: #{tpu_custom_call.1} parent=103 // pred_fallthru
          _
        // Predicated region
        $region117: #{tpu_custom_call.1} parent=103 // pred_check
          %p693 = pneg %p250
        $region118: #{tpu_custom_call.1} parent=103 // pred_check_branch
          %695 = sbr.rel (%p693) target = $region120
        $region119: #{tpu_custom_call.1} parent=103 // pred_region
          %696 = dma.done [#allocation10], 1024
        $region120: #{tpu_custom_call.1} parent=103 // pred_fallthru
          _
        // Predicated region
        $region121: #{tpu_custom_call.1} parent=103 // pred_check
          %p697 = pneg %p292
        $region122: #{tpu_custom_call.1} parent=103 // pred_check_branch
          %699 = sbr.rel (%p697) target = $region124
        $region123: #{tpu_custom_call.1} parent=103 // pred_region
          %700 = dma.done [#allocation10], 1024
        $region124: #{tpu_custom_call.1} parent=103 // pred_fallthru
          _
        // Predicated region
        $region125: #{tpu_custom_call.1} parent=103 // pred_check
          %p701 = pneg %p334
        $region126: #{tpu_custom_call.1} parent=103 // pred_check_branch
          %703 = sbr.rel (%p701) target = $region128
        $region127: #{tpu_custom_call.1} parent=103 // pred_region
          %704 = dma.done [#allocation13], 3072
        $region128: #{tpu_custom_call.1} parent=103 // pred_fallthru
          _
        // Predicated region
        $region129: #{tpu_custom_call.1} parent=103 // pred_check
          %p705 = pneg %p376
        $region130: #{tpu_custom_call.1} parent=103 // pred_check_branch
          %707 = sbr.rel (%p705) target = $region132
        $region131: #{tpu_custom_call.1} parent=103 // pred_region
          %708 = dma.done [#allocation13], 1024
        $region132: #{tpu_custom_call.1} parent=103 // pred_fallthru
          _
        // Predicated region
        $region133: #{tpu_custom_call.1} parent=103 // pred_check
          %p709 = pneg %p418
        $region134: #{tpu_custom_call.1} parent=103 // pred_check_branch
          %711 = sbr.rel (%p709) target = $region136
        $region135: #{tpu_custom_call.1} parent=103 // pred_region
          %712 = dma.done [#allocation16], 1024
        $region136: #{tpu_custom_call.1} parent=103 // pred_fallthru
          _
        %p713 = scmp.lt.s32.totalorder %s40, 1
        %s714 = scalar_select %p713, %s40, 1
        %s715 = smul.addr %s714, 4
        %s716 = smul.addr %s715, 8
        %s717 = scalar_lea.vmem %s0, %s716
        %p718 = pneg %p61
        %p719 = pneg %p58
        %p720 = pneg %p82
        %p721 = pneg %p79
        %p722 = pneg %p103
        %p723 = pneg %p100
        %p724 = pneg %p124
        %p725 = pneg %p121
        %p726 = pneg %p145
        %p727 = pneg %p142
        %p728 = pneg %p166
        %p729 = pneg %p163
        %p730 = pneg %p187
        %p731 = pneg %p184
        %p732 = pneg %p208
        %p733 = pneg %p205
        %p734 = pneg %p229
        %p735 = pneg %p226
        %p736 = pneg %p250
        %p737 = pneg %p247
        %p738 = pneg %p271
        %p739 = pneg %p268
        %p740 = pneg %p292
        %p741 = pneg %p289
        %p742 = pneg %p313
        %p743 = pneg %p310
        %p744 = pneg %p334
        %p745 = pneg %p331
        %p746 = pneg %p355
        %p747 = pneg %p352
        %p748 = pneg %p376
        %p749 = pneg %p373
        %p750 = pneg %p397
        %p751 = pneg %p394
        %p752 = pneg %p418
        %p753 = pneg %p415
        %p754 = pneg %p439
        %p755 = pneg %p436
        %p756 = pneg %p460
        %p757 = pneg %p457
        %p758 = pneg %p481
        %p759 = pneg %p478
        %p760 = pneg %p507
        %p761 = pneg %p504
        %s762 = sand.u32 %s494, 1
        %s763 = scalar_lea.sflag [#allocation5], %s762
        %s764 = sand.u32 %s494, 1
        %s765 = smul.addr %s764, 8
        %s766 = scalar_lea.vmem [#allocation17], %s765
        %p767 = scmp.lt.s32.totalorder %s40, 1
        %s768 = scalar_select %p767, %s40, 1
        %s769 = smul.addr %s768, 4
        %s770 = smul.addr %s769, 8
        %s771 = scalar_lea.vmem %s0, %s770
        %v773 = vld [vmem:[%s771] sm:$0xff]
        %v774 = vld [vmem:[%s771 + $0x8] sm:$0xff]
        %v775 = vld [vmem:[%s771 + $0x10] sm:$0xff]
        %v776 = vld [vmem:[%s771 + $0x18] sm:$0xff]
        %v777 = vpack.c.bf16 %v774, %v773
        %v778 = vpack.c.bf16 %v776, %v775
        %v779 = vld [vmem:[%s1] sm:$0xf]
        %v780 = vld [vmem:[%s2] sm:$0x1]
        %v782 = vlaneseq
        %v783 = vshrl.u32 %v782, 7
        %v784 = vsub.s32 0, %v783
        %v785 = vrot.slane %v780, %v784
        %vm787 = vcmask 64512
        %v789 = vsel %vm787, %v777, 0
        %v792 = vsel %vm787, %v778, 0
        %vm794 = vcmask 1043456
        %v796 = vsel %vm794, %v779, 0
        %798 = vmatprep.subr.bf16.mxu0 0
        %799 = vmatpush1.bf16.msra.mxu0 %v796
        %800 = vmatprep.subr.bf16.mxu0 0
        %801 = vmatpush1.bf16.msra.mxu0 0
        %802 = vmatprep.subr.bf16.mxu0 0
        %803 = vmatpush1.bf16.msra.mxu0 0
        %804 = vmatprep.subr.bf16.mxu0 0
        %805 = vmatpush1.bf16.msra.mxu0 0
        %806 = vmatprep.subr.bf16.mxu0 0
        %807 = vmatpush1.bf16.msra.mxu0 0
        %808 = vmatprep.subr.bf16.mxu0 0
        %809 = vmatpush1.bf16.msra.mxu0 0
        %810 = vmatprep.subr.bf16.mxu0 0
        %811 = vmatpush1.bf16.msra.mxu0 0
        %812 = vmatprep.subr.bf16.mxu0 0
        %813 = vmatpush1.bf16.msra.mxu0 0
        %814 = vmatprep.subr.bf16.mxu0 0
        %815 = vmatpush1.bf16.msra.mxu0 0
        %816 = vmatprep.subr.bf16.mxu0 0
        %817 = vmatpush1.bf16.msra.mxu0 0
        %818 = vmatprep.subr.bf16.mxu0 0
        %819 = vmatpush1.bf16.msra.mxu0 0
        %820 = vmatprep.subr.bf16.mxu0 0
        %821 = vmatpush1.bf16.msra.mxu0 0
        %822 = vmatprep.subr.bf16.mxu0 0
        %823 = vmatpush1.bf16.msra.mxu0 0
        %824 = vmatprep.subr.bf16.mxu0 0
        %825 = vmatpush1.bf16.msra.mxu0 0
        %826 = vmatprep.subr.bf16.mxu0 0
        %827 = vmatpush1.bf16.msra.mxu0 0
        %828 = vmatprep.subr.bf16.mxu0 0
        %829 = vmatpush1.bf16.msra.mxu0 0
        %830 = vmatprep.mubr.bf16.mxu0 0
        %831 = vmatmul.mubr.bf16.gmra.mrb[0].mxu0 %v789
        %v832 = vpop.f32.mrb[0].mxu0
        %v833 = vadd.f32 %v785, %v832
        %v834 = vpop.f32.mrb[0].mxu0
        %v835 = vpop.f32.mrb[0].mxu0
        %v836 = vadd.f32 %v785, %v835
        %v837 = vpop.f32.mrb[0].mxu0
        %838 = vmatprep.mubr.bf16.mxu0 0
        %839 = vmatmul.mubr.bf16.gmra.mrb[0].mxu0 %v792
        %v840 = vpop.f32.mrb[0].mxu0
        %v841 = vadd.f32 %v785, %v840
        %v842 = vpop.f32.mrb[0].mxu0
        %v843 = vpop.f32.mrb[0].mxu0
        %v844 = vadd.f32 %v785, %v843
        %v845 = vpop.f32.mrb[0].mxu0
        %846 = vdwg.mxu0
        %vm847 = vcmp.ge.f32.partialorder %v833, 0.0
        %vm848 = vcmp.ge.f32.partialorder %v836, 0.0
        %vm849 = vcmp.ge.f32.partialorder %v841, 0.0
        %vm850 = vcmp.ge.f32.partialorder %v844, 0.0
        %v851 = vmul.f32 %v833, 0.01
        %v852 = vmul.f32 %v836, 0.01
        %v853 = vmul.f32 %v841, 0.01
        %v854 = vmul.f32 %v844, 0.01
        %v855 = vsel %vm847, %v833, %v851
        %v856 = vsel %vm848, %v836, %v852
        %v857 = vsel %vm849, %v841, %v853
        %v858 = vsel %vm850, %v844, %v854
        %859 = vst [vmem:[#allocation2] sm:$0xff] %v855
        %860 = vst [vmem:[#allocation2 + $0x8] sm:$0xff] %v856
        %861 = vst [vmem:[#allocation2 + $0x10] sm:$0xff] %v857
        %862 = vst [vmem:[#allocation2 + $0x18] sm:$0xff] %v858
        %v863 = vld [vmem:[#allocation2] ss:$2 sm:$0xff]
        %s864 = scalar_lea.vmem [#allocation2], 16
        %v865 = vld [vmem:[%s864] ss:$2 sm:$0xff]
        %v866 = vpack.c.bf16 %v865, %v863
        %v867 = vld [vmem:[#allocation9] sm:$0xf]
        %v868 = vld [vmem:[#allocation9 + $0x4] sm:$0xf]
        %v869 = vld [vmem:[#allocation9 + $0x8] sm:$0xf]
        %v870 = vld [vmem:[#allocation9 + $0xc] sm:$0xf]
        %v871 = vld [vmem:[#allocation9 + $0x10] sm:$0xf]
        %v872 = vld [vmem:[#allocation9 + $0x14] sm:$0xf]
        %v873 = vld [vmem:[#allocation9 + $0x18] sm:$0xf]
        %v874 = vld [vmem:[#allocation9 + $0x1c] sm:$0xf]
        %v875 = vld [vmem:[#allocation9 + $0x20] sm:$0xf]
        %v876 = vld [vmem:[#allocation9 + $0x24] sm:$0xf]
        %v877 = vld [vmem:[#allocation9 + $0x28] sm:$0xf]
        %v878 = vld [vmem:[#allocation9 + $0x2c] sm:$0xf]
        %v879 = vld [vmem:[#allocation9 + $0x30] sm:$0xf]
        %v880 = vld [vmem:[#allocation9 + $0x34] sm:$0xf]
        %v881 = vld [vmem:[#allocation9 + $0x38] sm:$0xf]
        %v882 = vld [vmem:[#allocation9 + $0x3c] sm:$0xf]
        %v883 = vld [vmem:[%s10] sm:$0x1]
        %v885 = vlaneseq
        %v886 = vshrl.u32 %v885, 7
        %v887 = vsub.s32 0, %v886
        %v888 = vrot.slane %v883, %v887
        %v906 = vunpack.c.l.b16 %v867
        %v907 = vunpack.c.l.b16 %v868
        %v908 = vunpack.c.l.b16 %v869
        %v909 = vunpack.c.l.b16 %v870
        %v910 = vunpack.c.l.b16 %v871
        %v911 = vunpack.c.l.b16 %v872
        %v912 = vunpack.c.l.b16 %v873
        %v913 = vunpack.c.l.b16 %v874
        %v914 = vunpack.c.l.b16 %v875
        %v915 = vunpack.c.l.b16 %v876
        %v916 = vunpack.c.l.b16 %v877
        %v917 = vunpack.c.l.b16 %v878
        %v918 = vunpack.c.l.b16 %v879
        %v919 = vunpack.c.l.b16 %v880
        %v920 = vunpack.c.l.b16 %v881
        %v921 = vunpack.c.l.b16 %v882
        %v922 = vpack.c.b16 %v907, %v906
        %v923 = vpack.c.b16 %v909, %v908
        %v924 = vpack.c.b16 %v911, %v910
        %v925 = vpack.c.b16 %v913, %v912
        %v926 = vpack.c.b16 %v915, %v914
        %v927 = vpack.c.b16 %v917, %v916
        %v928 = vpack.c.b16 %v919, %v918
        %v929 = vpack.c.b16 %v921, %v920
        %938 = vmatprep.subr.bf16.mxu0 0
        %939 = vmatpush1.bf16.msra.mxu0 %v922
        %940 = vmatprep.subr.bf16.mxu0 0
        %941 = vmatpush1.bf16.msra.mxu0 %v923
        %942 = vmatprep.subr.bf16.mxu0 0
        %943 = vmatpush1.bf16.msra.mxu0 %v924
        %944 = vmatprep.subr.bf16.mxu0 0
        %945 = vmatpush1.bf16.msra.mxu0 %v925
        %946 = vmatprep.subr.bf16.mxu0 0
        %947 = vmatpush1.bf16.msra.mxu0 %v926
        %948 = vmatprep.subr.bf16.mxu0 0
        %949 = vmatpush1.bf16.msra.mxu0 %v927
        %950 = vmatprep.subr.bf16.mxu0 0
        %951 = vmatpush1.bf16.msra.mxu0 %v928
        %952 = vmatprep.subr.bf16.mxu0 0
        %953 = vmatpush1.bf16.msra.mxu0 %v929
        %954 = vmatprep.subr.bf16.mxu0 0
        %955 = vmatpush1.bf16.msra.mxu0 0
        %956 = vmatprep.subr.bf16.mxu0 0
        %957 = vmatpush1.bf16.msra.mxu0 0
        %958 = vmatprep.subr.bf16.mxu0 0
        %959 = vmatpush1.bf16.msra.mxu0 0
        %960 = vmatprep.subr.bf16.mxu0 0
        %961 = vmatpush1.bf16.msra.mxu0 0
        %962 = vmatprep.subr.bf16.mxu0 0
        %963 = vmatpush1.bf16.msra.mxu0 0
        %964 = vmatprep.subr.bf16.mxu0 0
        %965 = vmatpush1.bf16.msra.mxu0 0
        %966 = vmatprep.subr.bf16.mxu0 0
        %967 = vmatpush1.bf16.msra.mxu0 0
        %968 = vmatprep.subr.bf16.mxu0 0
        %969 = vmatpush1.bf16.msra.mxu0 0
        %970 = vmatprep.mubr.bf16.mxu0 0
        %971 = vmatmul.mubr.bf16.gmra.mrb[0].mxu0 %v866
        %v972 = vpop.f32.mrb[0].mxu0
        %v973 = vadd.f32 %v888, %v972
        %v974 = vpop.f32.mrb[0].mxu0
        %v975 = vpop.f32.mrb[0].mxu0
        %v976 = vadd.f32 %v888, %v975
        %v977 = vpop.f32.mrb[0].mxu0
        %978 = vdwg.mxu0
        %v979 = vpack.c.bf16 %v856, %v855
        %v980 = vpack.c.bf16 %v858, %v857
        %v981 = vld [vmem:[#allocation3] sm:$0xf]
        %v982 = vld [vmem:[#allocation3 + $0x4] sm:$0xf]
        %v983 = vld [vmem:[#allocation3 + $0x8] sm:$0xf]
        %v984 = vld [vmem:[#allocation3 + $0xc] sm:$0xf]
        %v985 = vld [vmem:[#allocation3 + $0x10] sm:$0xf]
        %v986 = vld [vmem:[#allocation3 + $0x14] sm:$0xf]
        %v987 = vld [vmem:[#allocation3 + $0x18] sm:$0xf]
        %v988 = vld [vmem:[#allocation3 + $0x1c] sm:$0xf]
        %v989 = vld [vmem:[#allocation3 + $0x20] sm:$0xf]
        %v990 = vld [vmem:[#allocation3 + $0x24] sm:$0xf]
        %v991 = vld [vmem:[#allocation3 + $0x28] sm:$0xf]
        %v992 = vld [vmem:[#allocation3 + $0x2c] sm:$0xf]
        %v993 = vld [vmem:[#allocation3 + $0x30] sm:$0xf]
        %v994 = vld [vmem:[#allocation3 + $0x34] sm:$0xf]
        %v995 = vld [vmem:[#allocation3 + $0x38] sm:$0xf]
        %v996 = vld [vmem:[#allocation3 + $0x3c] sm:$0xf]
        %v997 = vld [vmem:[%s4] sm:$0x1]
        %v999 = vlaneseq
        %v1000 = vshrl.u32 %v999, 7
        %v1001 = vsub.s32 0, %v1000
        %v1002 = vrot.slane %v997, %v1001
        %v1020 = vunpack.c.l.b16 %v981
        %v1021 = vunpack.c.l.b16 %v982
        %v1022 = vunpack.c.l.b16 %v983
        %v1023 = vunpack.c.l.b16 %v984
        %v1024 = vunpack.c.l.b16 %v985
        %v1025 = vunpack.c.l.b16 %v986
        %v1026 = vunpack.c.l.b16 %v987
        %v1027 = vunpack.c.l.b16 %v988
        %v1028 = vunpack.c.l.b16 %v989
        %v1029 = vunpack.c.l.b16 %v990
        %v1030 = vunpack.c.l.b16 %v991
        %v1031 = vunpack.c.l.b16 %v992
        %v1032 = vunpack.c.l.b16 %v993
        %v1033 = vunpack.c.l.b16 %v994
        %v1034 = vunpack.c.l.b16 %v995
        %v1035 = vunpack.c.l.b16 %v996
        %v1036 = vpack.c.b16 %v1021, %v1020
        %v1037 = vpack.c.b16 %v1023, %v1022
        %v1038 = vpack.c.b16 %v1025, %v1024
        %v1039 = vpack.c.b16 %v1027, %v1026
        %v1040 = vpack.c.b16 %v1029, %v1028
        %v1041 = vpack.c.b16 %v1031, %v1030
        %v1042 = vpack.c.b16 %v1033, %v1032
        %v1043 = vpack.c.b16 %v1035, %v1034
        %1052 = vmatprep.subr.bf16.mxu0 0
        %1053 = vmatpush1.bf16.msra.mxu0 %v1036
        %1054 = vmatprep.subr.bf16.mxu0 0
        %1055 = vmatpush1.bf16.msra.mxu0 %v1037
        %1056 = vmatprep.subr.bf16.mxu0 0
        %1057 = vmatpush1.bf16.msra.mxu0 %v1038
        %1058 = vmatprep.subr.bf16.mxu0 0
        %1059 = vmatpush1.bf16.msra.mxu0 %v1039
        %1060 = vmatprep.subr.bf16.mxu0 0
        %1061 = vmatpush1.bf16.msra.mxu0 %v1040
        %1062 = vmatprep.subr.bf16.mxu0 0
        %1063 = vmatpush1.bf16.msra.mxu0 %v1041
        %1064 = vmatprep.subr.bf16.mxu0 0
        %1065 = vmatpush1.bf16.msra.mxu0 %v1042
        %1066 = vmatprep.subr.bf16.mxu0 0
        %1067 = vmatpush1.bf16.msra.mxu0 %v1043
        %1068 = vmatprep.subr.bf16.mxu0 0
        %1069 = vmatpush1.bf16.msra.mxu0 0
        %1070 = vmatprep.subr.bf16.mxu0 0
        %1071 = vmatpush1.bf16.msra.mxu0 0
        %1072 = vmatprep.subr.bf16.mxu0 0
        %1073 = vmatpush1.bf16.msra.mxu0 0
        %1074 = vmatprep.subr.bf16.mxu0 0
        %1075 = vmatpush1.bf16.msra.mxu0 0
        %1076 = vmatprep.subr.bf16.mxu0 0
        %1077 = vmatpush1.bf16.msra.mxu0 0
        %1078 = vmatprep.subr.bf16.mxu0 0
        %1079 = vmatpush1.bf16.msra.mxu0 0
        %1080 = vmatprep.subr.bf16.mxu0 0
        %1081 = vmatpush1.bf16.msra.mxu0 0
        %1082 = vmatprep.subr.bf16.mxu0 0
        %1083 = vmatpush1.bf16.msra.mxu0 0
        %1084 = vmatprep.mubr.bf16.mxu0 0
        %1085 = vmatmul.mubr.bf16.gmra.mrb[0].mxu0 %v979
        %v1086 = vpop.f32.mrb[0].mxu0
        %v1087 = vadd.f32 %v1002, %v1086
        %v1088 = vpop.f32.mrb[0].mxu0
        %v1089 = vpop.f32.mrb[0].mxu0
        %v1090 = vadd.f32 %v1002, %v1089
        %v1091 = vpop.f32.mrb[0].mxu0
        %1092 = vmatprep.mubr.bf16.mxu0 0
        %1093 = vmatmul.mubr.bf16.gmra.mrb[0].mxu0 %v980
        %v1094 = vpop.f32.mrb[0].mxu0
        %v1095 = vadd.f32 %v1002, %v1094
        %v1096 = vpop.f32.mrb[0].mxu0
        %v1097 = vpop.f32.mrb[0].mxu0
        %v1098 = vadd.f32 %v1002, %v1097
        %v1099 = vpop.f32.mrb[0].mxu0
        %1100 = vdwg.mxu0
        %vm1101 = vcmp.ge.f32.partialorder %v1087, 0.0
        %vm1102 = vcmp.ge.f32.partialorder %v1090, 0.0
        %vm1103 = vcmp.ge.f32.partialorder %v1095, 0.0
        %vm1104 = vcmp.ge.f32.partialorder %v1098, 0.0
        %v1105 = vmul.f32 %v1087, 0.01
        %v1106 = vmul.f32 %v1090, 0.01
        %v1107 = vmul.f32 %v1095, 0.01
        %v1108 = vmul.f32 %v1098, 0.01
        %v1109 = vsel %vm1101, %v1087, %v1105
        %v1110 = vsel %vm1102, %v1090, %v1106
        %v1111 = vsel %vm1103, %v1095, %v1107
        %v1112 = vsel %vm1104, %v1098, %v1108
        %1113 = vst [vmem:[#allocation2] sm:$0x1] 0.0
        %1114 = vst [vmem:[#allocation2 + $0x1] sm:$0xff] %v1109
        %1115 = vst [vmem:[#allocation2 + $0x9] sm:$0xff] %v1110
        %1116 = vst [vmem:[#allocation2 + $0x11] sm:$0xff] %v1111
        %1117 = vst [vmem:[#allocation2 + $0x19] sm:$0xff] %v1112
        %1118 = vst [vmem:[#allocation2 + $0x21] sm:$0x1] 0.0
        %v1119 = vld [vmem:[#allocation2] ss:$2 sm:$0xff]
        %v1120 = vld [vmem:[%s864] ss:$2 sm:$0xff]
        %s1121 = scalar_lea.vmem [#allocation2], 1
        %v1122 = vld [vmem:[%s1121] ss:$2 sm:$0xff]
        %s1123 = scalar_lea.vmem [#allocation2], 17
        %v1124 = vld [vmem:[%s1123] ss:$2 sm:$0xff]
        %s1125 = scalar_lea.vmem [#allocation2], 2
        %v1126 = vld [vmem:[%s1125] ss:$2 sm:$0xff]
        %s1127 = scalar_lea.vmem [#allocation2], 18
        %v1128 = vld [vmem:[%s1127] ss:$2 sm:$0xff]
        %v1129 = vpack.c.bf16 %v1120, %v1119
        %v1130 = vpack.c.bf16 %v1124, %v1122
        %v1131 = vpack.c.bf16 %v1128, %v1126
        %v1132 = vld [vmem:[#allocation6] sm:$0xf]
        %v1133 = vld [vmem:[#allocation6 + $0x4] sm:$0xf]
        %v1134 = vld [vmem:[#allocation6 + $0x8] sm:$0xf]
        %v1135 = vld [vmem:[#allocation6 + $0xc] sm:$0xf]
        %v1136 = vld [vmem:[#allocation6 + $0x10] sm:$0xf]
        %v1137 = vld [vmem:[#allocation6 + $0x14] sm:$0xf]
        %v1138 = vld [vmem:[#allocation6 + $0x18] sm:$0xf]
        %v1139 = vld [vmem:[#allocation6 + $0x1c] sm:$0xf]
        %v1140 = vld [vmem:[#allocation6 + $0x20] sm:$0xf]
        %v1141 = vld [vmem:[#allocation6 + $0x24] sm:$0xf]
        %v1142 = vld [vmem:[#allocation6 + $0x28] sm:$0xf]
        %v1143 = vld [vmem:[#allocation6 + $0x2c] sm:$0xf]
        %v1144 = vld [vmem:[#allocation6 + $0x30] sm:$0xf]
        %v1145 = vld [vmem:[#allocation6 + $0x34] sm:$0xf]
        %v1146 = vld [vmem:[#allocation6 + $0x38] sm:$0xf]
        %v1147 = vld [vmem:[#allocation6 + $0x3c] sm:$0xf]
        %v1148 = vld [vmem:[#allocation6 + $0x40] sm:$0xf]
        %v1149 = vld [vmem:[#allocation6 + $0x44] sm:$0xf]
        %v1150 = vld [vmem:[#allocation6 + $0x48] sm:$0xf]
        %v1151 = vld [vmem:[#allocation6 + $0x4c] sm:$0xf]
        %v1152 = vld [vmem:[#allocation6 + $0x50] sm:$0xf]
        %v1153 = vld [vmem:[#allocation6 + $0x54] sm:$0xf]
        %v1154 = vld [vmem:[#allocation6 + $0x58] sm:$0xf]
        %v1155 = vld [vmem:[#allocation6 + $0x5c] sm:$0xf]
        %v1156 = vld [vmem:[#allocation6 + $0x60] sm:$0xf]
        %v1157 = vld [vmem:[#allocation6 + $0x64] sm:$0xf]
        %v1158 = vld [vmem:[#allocation6 + $0x68] sm:$0xf]
        %v1159 = vld [vmem:[#allocation6 + $0x6c] sm:$0xf]
        %v1160 = vld [vmem:[#allocation6 + $0x70] sm:$0xf]
        %v1161 = vld [vmem:[#allocation6 + $0x74] sm:$0xf]
        %v1162 = vld [vmem:[#allocation6 + $0x78] sm:$0xf]
        %v1163 = vld [vmem:[#allocation6 + $0x7c] sm:$0xf]
        %v1164 = vld [vmem:[#allocation6 + $0x80] sm:$0xf]
        %v1165 = vld [vmem:[#allocation6 + $0x84] sm:$0xf]
        %v1166 = vld [vmem:[#allocation6 + $0x88] sm:$0xf]
        %v1167 = vld [vmem:[#allocation6 + $0x8c] sm:$0xf]
        %v1168 = vld [vmem:[#allocation6 + $0x90] sm:$0xf]
        %v1169 = vld [vmem:[#allocation6 + $0x94] sm:$0xf]
        %v1170 = vld [vmem:[#allocation6 + $0x98] sm:$0xf]
        %v1171 = vld [vmem:[#allocation6 + $0x9c] sm:$0xf]
        %v1172 = vld [vmem:[#allocation6 + $0xa0] sm:$0xf]
        %v1173 = vld [vmem:[#allocation6 + $0xa4] sm:$0xf]
        %v1174 = vld [vmem:[#allocation6 + $0xa8] sm:$0xf]
        %v1175 = vld [vmem:[#allocation6 + $0xac] sm:$0xf]
        %v1176 = vld [vmem:[#allocation6 + $0xb0] sm:$0xf]
        %v1177 = vld [vmem:[#allocation6 + $0xb4] sm:$0xf]
        %v1178 = vld [vmem:[#allocation6 + $0xb8] sm:$0xf]
        %v1179 = vld [vmem:[#allocation6 + $0xbc] sm:$0xf]
        %v1180 = vld [vmem:[%s6] sm:$0x1]
        %v1182 = vlaneseq
        %v1183 = vshrl.u32 %v1182, 7
        %v1184 = vsub.s32 0, %v1183
        %v1185 = vrot.slane %v1180, %v1184
        %v1235 = vunpack.c.l.b16 %v1132
        %v1236 = vunpack.c.l.b16 %v1133
        %v1237 = vunpack.c.l.b16 %v1134
        %v1238 = vunpack.c.l.b16 %v1135
        %v1239 = vunpack.c.l.b16 %v1136
        %v1240 = vunpack.c.l.b16 %v1137
        %v1241 = vunpack.c.l.b16 %v1138
        %v1242 = vunpack.c.l.b16 %v1139
        %v1243 = vunpack.c.l.b16 %v1140
        %v1244 = vunpack.c.l.b16 %v1141
        %v1245 = vunpack.c.l.b16 %v1142
        %v1246 = vunpack.c.l.b16 %v1143
        %v1247 = vunpack.c.l.b16 %v1144
        %v1248 = vunpack.c.l.b16 %v1145
        %v1249 = vunpack.c.l.b16 %v1146
        %v1250 = vunpack.c.l.b16 %v1147
        %v1251 = vunpack.c.l.b16 %v1148
        %v1252 = vunpack.c.l.b16 %v1149
        %v1253 = vunpack.c.l.b16 %v1150
        %v1254 = vunpack.c.l.b16 %v1151
        %v1255 = vunpack.c.l.b16 %v1152
        %v1256 = vunpack.c.l.b16 %v1153
        %v1257 = vunpack.c.l.b16 %v1154
        %v1258 = vunpack.c.l.b16 %v1155
        %v1259 = vunpack.c.l.b16 %v1156
        %v1260 = vunpack.c.l.b16 %v1157
        %v1261 = vunpack.c.l.b16 %v1158
        %v1262 = vunpack.c.l.b16 %v1159
        %v1263 = vunpack.c.l.b16 %v1160
        %v1264 = vunpack.c.l.b16 %v1161
        %v1265 = vunpack.c.l.b16 %v1162
        %v1266 = vunpack.c.l.b16 %v1163
        %v1267 = vunpack.c.l.b16 %v1164
        %v1268 = vunpack.c.l.b16 %v1165
        %v1269 = vunpack.c.l.b16 %v1166
        %v1270 = vunpack.c.l.b16 %v1167
        %v1271 = vunpack.c.l.b16 %v1168
        %v1272 = vunpack.c.l.b16 %v1169
        %v1273 = vunpack.c.l.b16 %v1170
        %v1274 = vunpack.c.l.b16 %v1171
        %v1275 = vunpack.c.l.b16 %v1172
        %v1276 = vunpack.c.l.b16 %v1173
        %v1277 = vunpack.c.l.b16 %v1174
        %v1278 = vunpack.c.l.b16 %v1175
        %v1279 = vunpack.c.l.b16 %v1176
        %v1280 = vunpack.c.l.b16 %v1177
        %v1281 = vunpack.c.l.b16 %v1178
        %v1282 = vunpack.c.l.b16 %v1179
        %v1283 = vpack.c.b16 %v1236, %v1235
        %v1284 = vpack.c.b16 %v1238, %v1237
        %v1285 = vpack.c.b16 %v1240, %v1239
        %v1286 = vpack.c.b16 %v1242, %v1241
        %v1287 = vpack.c.b16 %v1244, %v1243
        %v1288 = vpack.c.b16 %v1246, %v1245
        %v1289 = vpack.c.b16 %v1248, %v1247
        %v1290 = vpack.c.b16 %v1250, %v1249
        %v1291 = vpack.c.b16 %v1252, %v1251
        %v1292 = vpack.c.b16 %v1254, %v1253
        %v1293 = vpack.c.b16 %v1256, %v1255
        %v1294 = vpack.c.b16 %v1258, %v1257
        %v1295 = vpack.c.b16 %v1260, %v1259
        %v1296 = vpack.c.b16 %v1262, %v1261
        %v1297 = vpack.c.b16 %v1264, %v1263
        %v1298 = vpack.c.b16 %v1266, %v1265
        %v1299 = vpack.c.b16 %v1268, %v1267
        %v1300 = vpack.c.b16 %v1270, %v1269
        %v1301 = vpack.c.b16 %v1272, %v1271
        %v1302 = vpack.c.b16 %v1274, %v1273
        %v1303 = vpack.c.b16 %v1276, %v1275
        %v1304 = vpack.c.b16 %v1278, %v1277
        %v1305 = vpack.c.b16 %v1280, %v1279
        %v1306 = vpack.c.b16 %v1282, %v1281
        %1331 = vmatprep.subr.bf16.mxu0 0
        %1332 = vmatpush1.bf16.msra.mxu0 %v1283
        %1333 = vmatprep.subr.bf16.mxu0 0
        %1334 = vmatpush1.bf16.msra.mxu0 %v1284
        %1335 = vmatprep.subr.bf16.mxu0 0
        %1336 = vmatpush1.bf16.msra.mxu0 %v1285
        %1337 = vmatprep.subr.bf16.mxu0 0
        %1338 = vmatpush1.bf16.msra.mxu0 %v1286
        %1339 = vmatprep.subr.bf16.mxu0 0
        %1340 = vmatpush1.bf16.msra.mxu0 %v1287
        %1341 = vmatprep.subr.bf16.mxu0 0
        %1342 = vmatpush1.bf16.msra.mxu0 %v1288
        %1343 = vmatprep.subr.bf16.mxu0 0
        %1344 = vmatpush1.bf16.msra.mxu0 %v1289
        %1345 = vmatprep.subr.bf16.mxu0 0
        %1346 = vmatpush1.bf16.msra.mxu0 %v1290
        %1347 = vmatprep.subr.bf16.mxu0 0
        %1348 = vmatpush1.bf16.msra.mxu0 %v1291
        %1349 = vmatprep.subr.bf16.mxu0 0
        %1350 = vmatpush1.bf16.msra.mxu0 %v1292
        %1351 = vmatprep.subr.bf16.mxu0 0
        %1352 = vmatpush1.bf16.msra.mxu0 %v1293
        %1353 = vmatprep.subr.bf16.mxu0 0
        %1354 = vmatpush1.bf16.msra.mxu0 %v1294
        %1355 = vmatprep.subr.bf16.mxu0 0
        %1356 = vmatpush1.bf16.msra.mxu0 %v1295
        %1357 = vmatprep.subr.bf16.mxu0 0
        %1358 = vmatpush1.bf16.msra.mxu0 %v1296
        %1359 = vmatprep.subr.bf16.mxu0 0
        %1360 = vmatpush1.bf16.msra.mxu0 %v1297
        %1361 = vmatprep.subr.bf16.mxu0 0
        %1362 = vmatpush1.bf16.msra.mxu0 %v1298
        %1363 = vmatprep.mubr.bf16.mxu0 %v1130
        %1364 = vmatmul.mubr.bf16.gmra.mrb[0].mxu0 %v1129
        %v1365 = vpop.f32.mrb[0].mxu0
        %v1366 = vadd.f32 %v1185, %v1365
        %v1367 = vpop.f32.mrb[0].mxu0
        %v1368 = vpop.f32.mrb[0].mxu0
        %v1369 = vadd.f32 %v1185, %v1368
        %v1370 = vpop.f32.mrb[0].mxu0
        %1371 = vdwg.mxu0
        %1372 = vmatprep.subr.bf16.mxu0 0
        %1373 = vmatpush1.bf16.msra.mxu0 %v1299
        %1374 = vmatprep.subr.bf16.mxu0 0
        %1375 = vmatpush1.bf16.msra.mxu0 %v1300
        %1376 = vmatprep.subr.bf16.mxu0 0
        %1377 = vmatpush1.bf16.msra.mxu0 %v1301
        %1378 = vmatprep.subr.bf16.mxu0 0
        %1379 = vmatpush1.bf16.msra.mxu0 %v1302
        %1380 = vmatprep.subr.bf16.mxu0 0
        %1381 = vmatpush1.bf16.msra.mxu0 %v1303
        %1382 = vmatprep.subr.bf16.mxu0 0
        %1383 = vmatpush1.bf16.msra.mxu0 %v1304
        %1384 = vmatprep.subr.bf16.mxu0 0
        %1385 = vmatpush1.bf16.msra.mxu0 %v1305
        %1386 = vmatprep.subr.bf16.mxu0 0
        %1387 = vmatpush1.bf16.msra.mxu0 %v1306
        %1388 = vmatprep.subr.bf16.mxu0 0
        %1389 = vmatpush1.bf16.msra.mxu0 0
        %1390 = vmatprep.subr.bf16.mxu0 0
        %1391 = vmatpush1.bf16.msra.mxu0 0
        %1392 = vmatprep.subr.bf16.mxu0 0
        %1393 = vmatpush1.bf16.msra.mxu0 0
        %1394 = vmatprep.subr.bf16.mxu0 0
        %1395 = vmatpush1.bf16.msra.mxu0 0
        %1396 = vmatprep.subr.bf16.mxu0 0
        %1397 = vmatpush1.bf16.msra.mxu0 0
        %1398 = vmatprep.subr.bf16.mxu0 0
        %1399 = vmatpush1.bf16.msra.mxu0 0
        %1400 = vmatprep.subr.bf16.mxu0 0
        %1401 = vmatpush1.bf16.msra.mxu0 0
        %1402 = vmatprep.subr.bf16.mxu0 0
        %1403 = vmatpush1.bf16.msra.mxu0 0
        %1404 = vmatprep.mubr.bf16.mxu0 0
        %1405 = vmatmul.mubr.bf16.gmra.mrb[0].mxu0 %v1131
        %v1406 = vpop.f32.mrb[0].mxu0
        %v1407 = vadd.f32 %v1366, %v1406
        %v1408 = vpop.f32.mrb[0].mxu0
        %v1409 = vpop.f32.mrb[0].mxu0
        %v1410 = vadd.f32 %v1369, %v1409
        %v1411 = vpop.f32.mrb[0].mxu0
        %1412 = vdwg.mxu0
        %vm1413 = vcmp.ge.f32.partialorder %v1407, 0.0
        %vm1414 = vcmp.ge.f32.partialorder %v1410, 0.0
        %v1415 = vmul.f32 %v1407, 0.01
        %v1416 = vmul.f32 %v1410, 0.01
        %v1417 = vsel %vm1413, %v1407, %v1415
        %v1418 = vsel %vm1414, %v1410, %v1416
        %v1419 = vpack.c.bf16 %v1418, %v1417
        %v1420 = vld [vmem:[#allocation8] sm:$0xf]
        %v1421 = vld [vmem:[#allocation8 + $0x4] sm:$0xf]
        %v1422 = vld [vmem:[#allocation8 + $0x8] sm:$0xf]
        %v1423 = vld [vmem:[#allocation8 + $0xc] sm:$0xf]
        %v1424 = vld [vmem:[#allocation8 + $0x10] sm:$0xf]
        %v1425 = vld [vmem:[#allocation8 + $0x14] sm:$0xf]
        %v1426 = vld [vmem:[#allocation8 + $0x18] sm:$0xf]
        %v1427 = vld [vmem:[#allocation8 + $0x1c] sm:$0xf]
        %v1428 = vld [vmem:[#allocation8 + $0x20] sm:$0xf]
        %v1429 = vld [vmem:[#allocation8 + $0x24] sm:$0xf]
        %v1430 = vld [vmem:[#allocation8 + $0x28] sm:$0xf]
        %v1431 = vld [vmem:[#allocation8 + $0x2c] sm:$0xf]
        %v1432 = vld [vmem:[#allocation8 + $0x30] sm:$0xf]
        %v1433 = vld [vmem:[#allocation8 + $0x34] sm:$0xf]
        %v1434 = vld [vmem:[#allocation8 + $0x38] sm:$0xf]
        %v1435 = vld [vmem:[#allocation8 + $0x3c] sm:$0xf]
        %v1436 = vld [vmem:[%s8] sm:$0x1]
        %v1438 = vlaneseq
        %v1439 = vshrl.u32 %v1438, 7
        %v1440 = vsub.s32 0, %v1439
        %v1441 = vrot.slane %v1436, %v1440
        %v1459 = vunpack.c.l.b16 %v1420
        %v1460 = vunpack.c.l.b16 %v1421
        %v1461 = vunpack.c.l.b16 %v1422
        %v1462 = vunpack.c.l.b16 %v1423
        %v1463 = vunpack.c.l.b16 %v1424
        %v1464 = vunpack.c.l.b16 %v1425
        %v1465 = vunpack.c.l.b16 %v1426
        %v1466 = vunpack.c.l.b16 %v1427
        %v1467 = vunpack.c.l.b16 %v1428
        %v1468 = vunpack.c.l.b16 %v1429
        %v1469 = vunpack.c.l.b16 %v1430
        %v1470 = vunpack.c.l.b16 %v1431
        %v1471 = vunpack.c.l.b16 %v1432
        %v1472 = vunpack.c.l.b16 %v1433
        %v1473 = vunpack.c.l.b16 %v1434
        %v1474 = vunpack.c.l.b16 %v1435
        %v1475 = vpack.c.b16 %v1460, %v1459
        %v1476 = vpack.c.b16 %v1462, %v1461
        %v1477 = vpack.c.b16 %v1464, %v1463
        %v1478 = vpack.c.b16 %v1466, %v1465
        %v1479 = vpack.c.b16 %v1468, %v1467
        %v1480 = vpack.c.b16 %v1470, %v1469
        %v1481 = vpack.c.b16 %v1472, %v1471
        %v1482 = vpack.c.b16 %v1474, %v1473
        %1491 = vmatprep.subr.bf16.mxu0 0
        %1492 = vmatpush1.bf16.msra.mxu0 %v1475
        %1493 = vmatprep.subr.bf16.mxu0 0
        %1494 = vmatpush1.bf16.msra.mxu0 %v1476
        %1495 = vmatprep.subr.bf16.mxu0 0
        %1496 = vmatpush1.bf16.msra.mxu0 %v1477
        %1497 = vmatprep.subr.bf16.mxu0 0
        %1498 = vmatpush1.bf16.msra.mxu0 %v1478
        %1499 = vmatprep.subr.bf16.mxu0 0
        %1500 = vmatpush1.bf16.msra.mxu0 %v1479
        %1501 = vmatprep.subr.bf16.mxu0 0
        %1502 = vmatpush1.bf16.msra.mxu0 %v1480
        %1503 = vmatprep.subr.bf16.mxu0 0
        %1504 = vmatpush1.bf16.msra.mxu0 %v1481
        %1505 = vmatprep.subr.bf16.mxu0 0
        %1506 = vmatpush1.bf16.msra.mxu0 %v1482
        %1507 = vmatprep.subr.bf16.mxu0 0
        %1508 = vmatpush1.bf16.msra.mxu0 0
        %1509 = vmatprep.subr.bf16.mxu0 0
        %1510 = vmatpush1.bf16.msra.mxu0 0
        %1511 = vmatprep.subr.bf16.mxu0 0
        %1512 = vmatpush1.bf16.msra.mxu0 0
        %1513 = vmatprep.subr.bf16.mxu0 0
        %1514 = vmatpush1.bf16.msra.mxu0 0
        %1515 = vmatprep.subr.bf16.mxu0 0
        %1516 = vmatpush1.bf16.msra.mxu0 0
        %1517 = vmatprep.subr.bf16.mxu0 0
        %1518 = vmatpush1.bf16.msra.mxu0 0
        %1519 = vmatprep.subr.bf16.mxu0 0
        %1520 = vmatpush1.bf16.msra.mxu0 0
        %1521 = vmatprep.subr.bf16.mxu0 0
        %1522 = vmatpush1.bf16.msra.mxu0 0
        %1523 = vmatprep.mubr.bf16.mxu0 0
        %1524 = vmatmul.mubr.bf16.gmra.mrb[0].mxu0 %v1419
        %v1525 = vpop.f32.mrb[0].mxu0
        %v1526 = vadd.f32 %v1441, %v1525
        %v1527 = vpop.f32.mrb[0].mxu0
        %v1528 = vpop.f32.mrb[0].mxu0
        %v1529 = vadd.f32 %v1441, %v1528
        %v1530 = vpop.f32.mrb[0].mxu0
        %1531 = vdwg.mxu0
        %v1532 = vadd.f32 %v1526, %v973
        %v1533 = vadd.f32 %v1529, %v976
        %vm1534 = vcmp.ge.f32.partialorder %v1532, 0.0
        %vm1535 = vcmp.ge.f32.partialorder %v1533, 0.0
        %v1536 = vmul.f32 %v1532, 0.01
        %v1537 = vmul.f32 %v1533, 0.01
        %v1538 = vsel %vm1534, %v1532, %v1536
        %v1539 = vsel %vm1535, %v1533, %v1537
        %1540 = vst [vmem:[#allocation2] sm:$0xff] %v1538
        %1541 = vst [vmem:[#allocation2 + $0x8] sm:$0xff] %v1539
        %v1542 = vld [vmem:[#allocation2] ss:$2 sm:$0xff]
        %v1543 = vpack.c.bf16 %v1542, %v1542
        %v1544 = vld [vmem:[#allocation15] sm:$0xf]
        %v1545 = vld [vmem:[#allocation15 + $0x4] sm:$0xf]
        %v1546 = vld [vmem:[#allocation15 + $0x8] sm:$0xf]
        %v1547 = vld [vmem:[#allocation15 + $0xc] sm:$0xf]
        %v1548 = vld [vmem:[#allocation15 + $0x10] sm:$0xf]
        %v1549 = vld [vmem:[#allocation15 + $0x14] sm:$0xf]
        %v1550 = vld [vmem:[#allocation15 + $0x18] sm:$0xf]
        %v1551 = vld [vmem:[#allocation15 + $0x1c] sm:$0xf]
        %v1552 = vld [vmem:[#allocation15 + $0x20] sm:$0xf]
        %v1553 = vld [vmem:[#allocation15 + $0x24] sm:$0xf]
        %v1554 = vld [vmem:[#allocation15 + $0x28] sm:$0xf]
        %v1555 = vld [vmem:[#allocation15 + $0x2c] sm:$0xf]
        %v1556 = vld [vmem:[#allocation15 + $0x30] sm:$0xf]
        %v1557 = vld [vmem:[#allocation15 + $0x34] sm:$0xf]
        %v1558 = vld [vmem:[#allocation15 + $0x38] sm:$0xf]
        %v1559 = vld [vmem:[#allocation15 + $0x3c] sm:$0xf]
        %v1560 = vld [vmem:[%s18] sm:$0x1]
        %v1562 = vlaneseq
        %v1563 = vshrl.u32 %v1562, 7
        %v1564 = vsub.s32 0, %v1563
        %v1565 = vrot.slane %v1560, %v1564
        %v1583 = vunpack.c.l.b16 %v1544
        %v1584 = vunpack.c.l.b16 %v1545
        %v1585 = vunpack.c.l.b16 %v1546
        %v1586 = vunpack.c.l.b16 %v1547
        %v1587 = vunpack.c.l.b16 %v1548
        %v1588 = vunpack.c.l.b16 %v1549
        %v1589 = vunpack.c.l.b16 %v1550
        %v1590 = vunpack.c.l.b16 %v1551
        %v1591 = vunpack.c.l.b16 %v1552
        %v1592 = vunpack.c.l.b16 %v1553
        %v1593 = vunpack.c.l.b16 %v1554
        %v1594 = vunpack.c.l.b16 %v1555
        %v1595 = vunpack.c.l.b16 %v1556
        %v1596 = vunpack.c.l.b16 %v1557
        %v1597 = vunpack.c.l.b16 %v1558
        %v1598 = vunpack.c.l.b16 %v1559
        %v1599 = vpack.c.b16 %v1584, %v1583
        %v1600 = vpack.c.b16 %v1586, %v1585
        %v1601 = vpack.c.b16 %v1588, %v1587
        %v1602 = vpack.c.b16 %v1590, %v1589
        %v1603 = vpack.c.b16 %v1592, %v1591
        %v1604 = vpack.c.b16 %v1594, %v1593
        %v1605 = vpack.c.b16 %v1596, %v1595
        %v1606 = vpack.c.b16 %v1598, %v1597
        %1615 = vmatprep.subr.bf16.mxu0 0
        %1616 = vmatpush1.bf16.msra.mxu0 %v1599
        %1617 = vmatprep.subr.bf16.mxu0 0
        %1618 = vmatpush1.bf16.msra.mxu0 %v1600
        %1619 = vmatprep.subr.bf16.mxu0 0
        %1620 = vmatpush1.bf16.msra.mxu0 %v1601
        %1621 = vmatprep.subr.bf16.mxu0 0
        %1622 = vmatpush1.bf16.msra.mxu0 %v1602
        %1623 = vmatprep.subr.bf16.mxu0 0
        %1624 = vmatpush1.bf16.msra.mxu0 %v1603
        %1625 = vmatprep.subr.bf16.mxu0 0
        %1626 = vmatpush1.bf16.msra.mxu0 %v1604
        %1627 = vmatprep.subr.bf16.mxu0 0
        %1628 = vmatpush1.bf16.msra.mxu0 %v1605
        %1629 = vmatprep.subr.bf16.mxu0 0
        %1630 = vmatpush1.bf16.msra.mxu0 %v1606
        %1631 = vmatprep.subr.bf16.mxu0 0
        %1632 = vmatpush1.bf16.msra.mxu0 0
        %1633 = vmatprep.subr.bf16.mxu0 0
        %1634 = vmatpush1.bf16.msra.mxu0 0
        %1635 = vmatprep.subr.bf16.mxu0 0
        %1636 = vmatpush1.bf16.msra.mxu0 0
        %1637 = vmatprep.subr.bf16.mxu0 0
        %1638 = vmatpush1.bf16.msra.mxu0 0
        %1639 = vmatprep.subr.bf16.mxu0 0
        %1640 = vmatpush1.bf16.msra.mxu0 0
        %1641 = vmatprep.subr.bf16.mxu0 0
        %1642 = vmatpush1.bf16.msra.mxu0 0
        %1643 = vmatprep.subr.bf16.mxu0 0
        %1644 = vmatpush1.bf16.msra.mxu0 0
        %1645 = vmatprep.subr.bf16.mxu0 0
        %1646 = vmatpush1.bf16.msra.mxu0 0
        %1647 = vmatprep.mubr.bf16.mxu0 0
        %1648 = vmatmul.mubr.bf16.gmra.mrb[0].mxu0 %v1543
        %v1649 = vpop.f32.mrb[0].mxu0
        %v1650 = vadd.f32 %v1565, %v1649
        %v1651 = vpop.f32.mrb[0].mxu0
        %v1652 = vpop.f32.mrb[0].mxu0
        %v1653 = vpop.f32.mrb[0].mxu0
        %1654 = vdwg.mxu0
        %v1655 = vpack.c.bf16 %v1539, %v1538
        %v1656 = vld [vmem:[#allocation11] sm:$0xf]
        %v1657 = vld [vmem:[#allocation11 + $0x4] sm:$0xf]
        %v1658 = vld [vmem:[#allocation11 + $0x8] sm:$0xf]
        %v1659 = vld [vmem:[#allocation11 + $0xc] sm:$0xf]
        %v1660 = vld [vmem:[#allocation11 + $0x10] sm:$0xf]
        %v1661 = vld [vmem:[#allocation11 + $0x14] sm:$0xf]
        %v1662 = vld [vmem:[#allocation11 + $0x18] sm:$0xf]
        %v1663 = vld [vmem:[#allocation11 + $0x1c] sm:$0xf]
        %v1664 = vld [vmem:[#allocation11 + $0x20] sm:$0xf]
        %v1665 = vld [vmem:[#allocation11 + $0x24] sm:$0xf]
        %v1666 = vld [vmem:[#allocation11 + $0x28] sm:$0xf]
        %v1667 = vld [vmem:[#allocation11 + $0x2c] sm:$0xf]
        %v1668 = vld [vmem:[#allocation11 + $0x30] sm:$0xf]
        %v1669 = vld [vmem:[#allocation11 + $0x34] sm:$0xf]
        %v1670 = vld [vmem:[#allocation11 + $0x38] sm:$0xf]
        %v1671 = vld [vmem:[#allocation11 + $0x3c] sm:$0xf]
        %v1672 = vld [vmem:[%s12] sm:$0x1]
        %v1674 = vlaneseq
        %v1675 = vshrl.u32 %v1674, 7
        %v1676 = vsub.s32 0, %v1675
        %v1677 = vrot.slane %v1672, %v1676
        %v1695 = vunpack.c.l.b16 %v1656
        %v1696 = vunpack.c.l.b16 %v1657
        %v1697 = vunpack.c.l.b16 %v1658
        %v1698 = vunpack.c.l.b16 %v1659
        %v1699 = vunpack.c.l.b16 %v1660
        %v1700 = vunpack.c.l.b16 %v1661
        %v1701 = vunpack.c.l.b16 %v1662
        %v1702 = vunpack.c.l.b16 %v1663
        %v1703 = vunpack.c.l.b16 %v1664
        %v1704 = vunpack.c.l.b16 %v1665
        %v1705 = vunpack.c.l.b16 %v1666
        %v1706 = vunpack.c.l.b16 %v1667
        %v1707 = vunpack.c.l.b16 %v1668
        %v1708 = vunpack.c.l.b16 %v1669
        %v1709 = vunpack.c.l.b16 %v1670
        %v1710 = vunpack.c.l.b16 %v1671
        %v1711 = vpack.c.b16 %v1696, %v1695
        %v1712 = vpack.c.b16 %v1698, %v1697
        %v1713 = vpack.c.b16 %v1700, %v1699
        %v1714 = vpack.c.b16 %v1702, %v1701
        %v1715 = vpack.c.b16 %v1704, %v1703
        %v1716 = vpack.c.b16 %v1706, %v1705
        %v1717 = vpack.c.b16 %v1708, %v1707
        %v1718 = vpack.c.b16 %v1710, %v1709
        %1727 = vmatprep.subr.bf16.mxu0 0
        %1728 = vmatpush1.bf16.msra.mxu0 %v1711
        %1729 = vmatprep.subr.bf16.mxu0 0
        %1730 = vmatpush1.bf16.msra.mxu0 %v1712
        %1731 = vmatprep.subr.bf16.mxu0 0
        %1732 = vmatpush1.bf16.msra.mxu0 %v1713
        %1733 = vmatprep.subr.bf16.mxu0 0
        %1734 = vmatpush1.bf16.msra.mxu0 %v1714
        %1735 = vmatprep.subr.bf16.mxu0 0
        %1736 = vmatpush1.bf16.msra.mxu0 %v1715
        %1737 = vmatprep.subr.bf16.mxu0 0
        %1738 = vmatpush1.bf16.msra.mxu0 %v1716
        %1739 = vmatprep.subr.bf16.mxu0 0
        %1740 = vmatpush1.bf16.msra.mxu0 %v1717
        %1741 = vmatprep.subr.bf16.mxu0 0
        %1742 = vmatpush1.bf16.msra.mxu0 %v1718
        %1743 = vmatprep.subr.bf16.mxu0 0
        %1744 = vmatpush1.bf16.msra.mxu0 0
        %1745 = vmatprep.subr.bf16.mxu0 0
        %1746 = vmatpush1.bf16.msra.mxu0 0
        %1747 = vmatprep.subr.bf16.mxu0 0
        %1748 = vmatpush1.bf16.msra.mxu0 0
        %1749 = vmatprep.subr.bf16.mxu0 0
        %1750 = vmatpush1.bf16.msra.mxu0 0
        %1751 = vmatprep.subr.bf16.mxu0 0
        %1752 = vmatpush1.bf16.msra.mxu0 0
        %1753 = vmatprep.subr.bf16.mxu0 0
        %1754 = vmatpush1.bf16.msra.mxu0 0
        %1755 = vmatprep.subr.bf16.mxu0 0
        %1756 = vmatpush1.bf16.msra.mxu0 0
        %1757 = vmatprep.subr.bf16.mxu0 0
        %1758 = vmatpush1.bf16.msra.mxu0 0
        %1759 = vmatprep.mubr.bf16.mxu0 0
        %1760 = vmatmul.mubr.bf16.gmra.mrb[0].mxu0 %v1655
        %v1761 = vpop.f32.mrb[0].mxu0
        %v1762 = vadd.f32 %v1677, %v1761
        %v1763 = vpop.f32.mrb[0].mxu0
        %v1764 = vpop.f32.mrb[0].mxu0
        %v1765 = vadd.f32 %v1677, %v1764
        %v1766 = vpop.f32.mrb[0].mxu0
        %1767 = vdwg.mxu0
        %vm1768 = vcmp.ge.f32.partialorder %v1762, 0.0
        %vm1769 = vcmp.ge.f32.partialorder %v1765, 0.0
        %v1770 = vmul.f32 %v1762, 0.01
        %v1771 = vmul.f32 %v1765, 0.01
        %v1772 = vsel %vm1768, %v1762, %v1770
        %v1773 = vsel %vm1769, %v1765, %v1771
        %1774 = vst [vmem:[#allocation2] sm:$0x1] 0.0
        %1775 = vst [vmem:[#allocation2 + $0x1] sm:$0xff] %v1772
        %1776 = vst [vmem:[#allocation2 + $0x9] sm:$0xff] %v1773
        %1777 = vst [vmem:[#allocation2 + $0x11] sm:$0x1] 0.0
        %v1778 = vld [vmem:[#allocation2] ss:$2 sm:$0xff]
        %v1779 = vld [vmem:[%s1121] ss:$2 sm:$0xff]
        %v1780 = vld [vmem:[%s1125] ss:$2 sm:$0xff]
        %v1781 = vpack.c.bf16 %v1778, %v1778
        %v1782 = vpack.c.bf16 %v1779, %v1779
        %v1783 = vpack.c.bf16 %v1780, %v1780
        %v1784 = vld [vmem:[#allocation12] sm:$0xf]
        %v1785 = vld [vmem:[#allocation12 + $0x4] sm:$0xf]
        %v1786 = vld [vmem:[#allocation12 + $0x8] sm:$0xf]
        %v1787 = vld [vmem:[#allocation12 + $0xc] sm:$0xf]
        %v1788 = vld [vmem:[#allocation12 + $0x10] sm:$0xf]
        %v1789 = vld [vmem:[#allocation12 + $0x14] sm:$0xf]
        %v1790 = vld [vmem:[#allocation12 + $0x18] sm:$0xf]
        %v1791 = vld [vmem:[#allocation12 + $0x1c] sm:$0xf]
        %v1792 = vld [vmem:[#allocation12 + $0x20] sm:$0xf]
        %v1793 = vld [vmem:[#allocation12 + $0x24] sm:$0xf]
        %v1794 = vld [vmem:[#allocation12 + $0x28] sm:$0xf]
        %v1795 = vld [vmem:[#allocation12 + $0x2c] sm:$0xf]
        %v1796 = vld [vmem:[#allocation12 + $0x30] sm:$0xf]
        %v1797 = vld [vmem:[#allocation12 + $0x34] sm:$0xf]
        %v1798 = vld [vmem:[#allocation12 + $0x38] sm:$0xf]
        %v1799 = vld [vmem:[#allocation12 + $0x3c] sm:$0xf]
        %v1800 = vld [vmem:[#allocation12 + $0x40] sm:$0xf]
        %v1801 = vld [vmem:[#allocation12 + $0x44] sm:$0xf]
        %v1802 = vld [vmem:[#allocation12 + $0x48] sm:$0xf]
        %v1803 = vld [vmem:[#allocation12 + $0x4c] sm:$0xf]
        %v1804 = vld [vmem:[#allocation12 + $0x50] sm:$0xf]
        %v1805 = vld [vmem:[#allocation12 + $0x54] sm:$0xf]
        %v1806 = vld [vmem:[#allocation12 + $0x58] sm:$0xf]
        %v1807 = vld [vmem:[#allocation12 + $0x5c] sm:$0xf]
        %v1808 = vld [vmem:[#allocation12 + $0x60] sm:$0xf]
        %v1809 = vld [vmem:[#allocation12 + $0x64] sm:$0xf]
        %v1810 = vld [vmem:[#allocation12 + $0x68] sm:$0xf]
        %v1811 = vld [vmem:[#allocation12 + $0x6c] sm:$0xf]
        %v1812 = vld [vmem:[#allocation12 + $0x70] sm:$0xf]
        %v1813 = vld [vmem:[#allocation12 + $0x74] sm:$0xf]
        %v1814 = vld [vmem:[#allocation12 + $0x78] sm:$0xf]
        %v1815 = vld [vmem:[#allocation12 + $0x7c] sm:$0xf]
        %v1816 = vld [vmem:[#allocation12 + $0x80] sm:$0xf]
        %v1817 = vld [vmem:[#allocation12 + $0x84] sm:$0xf]
        %v1818 = vld [vmem:[#allocation12 + $0x88] sm:$0xf]
        %v1819 = vld [vmem:[#allocation12 + $0x8c] sm:$0xf]
        %v1820 = vld [vmem:[#allocation12 + $0x90] sm:$0xf]
        %v1821 = vld [vmem:[#allocation12 + $0x94] sm:$0xf]
        %v1822 = vld [vmem:[#allocation12 + $0x98] sm:$0xf]
        %v1823 = vld [vmem:[#allocation12 + $0x9c] sm:$0xf]
        %v1824 = vld [vmem:[#allocation12 + $0xa0] sm:$0xf]
        %v1825 = vld [vmem:[#allocation12 + $0xa4] sm:$0xf]
        %v1826 = vld [vmem:[#allocation12 + $0xa8] sm:$0xf]
        %v1827 = vld [vmem:[#allocation12 + $0xac] sm:$0xf]
        %v1828 = vld [vmem:[#allocation12 + $0xb0] sm:$0xf]
        %v1829 = vld [vmem:[#allocation12 + $0xb4] sm:$0xf]
        %v1830 = vld [vmem:[#allocation12 + $0xb8] sm:$0xf]
        %v1831 = vld [vmem:[#allocation12 + $0xbc] sm:$0xf]
        %v1832 = vld [vmem:[%s14] sm:$0x1]
        %v1834 = vlaneseq
        %v1835 = vshrl.u32 %v1834, 7
        %v1836 = vsub.s32 0, %v1835
        %v1837 = vrot.slane %v1832, %v1836
        %v1887 = vunpack.c.l.b16 %v1784
        %v1888 = vunpack.c.l.b16 %v1785
        %v1889 = vunpack.c.l.b16 %v1786
        %v1890 = vunpack.c.l.b16 %v1787
        %v1891 = vunpack.c.l.b16 %v1788
        %v1892 = vunpack.c.l.b16 %v1789
        %v1893 = vunpack.c.l.b16 %v1790
        %v1894 = vunpack.c.l.b16 %v1791
        %v1895 = vunpack.c.l.b16 %v1792
        %v1896 = vunpack.c.l.b16 %v1793
        %v1897 = vunpack.c.l.b16 %v1794
        %v1898 = vunpack.c.l.b16 %v1795
        %v1899 = vunpack.c.l.b16 %v1796
        %v1900 = vunpack.c.l.b16 %v1797
        %v1901 = vunpack.c.l.b16 %v1798
        %v1902 = vunpack.c.l.b16 %v1799
        %v1903 = vunpack.c.l.b16 %v1800
        %v1904 = vunpack.c.l.b16 %v1801
        %v1905 = vunpack.c.l.b16 %v1802
        %v1906 = vunpack.c.l.b16 %v1803
        %v1907 = vunpack.c.l.b16 %v1804
        %v1908 = vunpack.c.l.b16 %v1805
        %v1909 = vunpack.c.l.b16 %v1806
        %v1910 = vunpack.c.l.b16 %v1807
        %v1911 = vunpack.c.l.b16 %v1808
        %v1912 = vunpack.c.l.b16 %v1809
        %v1913 = vunpack.c.l.b16 %v1810
        %v1914 = vunpack.c.l.b16 %v1811
        %v1915 = vunpack.c.l.b16 %v1812
        %v1916 = vunpack.c.l.b16 %v1813
        %v1917 = vunpack.c.l.b16 %v1814
        %v1918 = vunpack.c.l.b16 %v1815
        %v1919 = vunpack.c.l.b16 %v1816
        %v1920 = vunpack.c.l.b16 %v1817
        %v1921 = vunpack.c.l.b16 %v1818
        %v1922 = vunpack.c.l.b16 %v1819
        %v1923 = vunpack.c.l.b16 %v1820
        %v1924 = vunpack.c.l.b16 %v1821
        %v1925 = vunpack.c.l.b16 %v1822
        %v1926 = vunpack.c.l.b16 %v1823
        %v1927 = vunpack.c.l.b16 %v1824
        %v1928 = vunpack.c.l.b16 %v1825
        %v1929 = vunpack.c.l.b16 %v1826
        %v1930 = vunpack.c.l.b16 %v1827
        %v1931 = vunpack.c.l.b16 %v1828
        %v1932 = vunpack.c.l.b16 %v1829
        %v1933 = vunpack.c.l.b16 %v1830
        %v1934 = vunpack.c.l.b16 %v1831
        %v1935 = vpack.c.b16 %v1888, %v1887
        %v1936 = vpack.c.b16 %v1890, %v1889
        %v1937 = vpack.c.b16 %v1892, %v1891
        %v1938 = vpack.c.b16 %v1894, %v1893
        %v1939 = vpack.c.b16 %v1896, %v1895
        %v1940 = vpack.c.b16 %v1898, %v1897
        %v1941 = vpack.c.b16 %v1900, %v1899
        %v1942 = vpack.c.b16 %v1902, %v1901
        %v1943 = vpack.c.b16 %v1904, %v1903
        %v1944 = vpack.c.b16 %v1906, %v1905
        %v1945 = vpack.c.b16 %v1908, %v1907
        %v1946 = vpack.c.b16 %v1910, %v1909
        %v1947 = vpack.c.b16 %v1912, %v1911
        %v1948 = vpack.c.b16 %v1914, %v1913
        %v1949 = vpack.c.b16 %v1916, %v1915
        %v1950 = vpack.c.b16 %v1918, %v1917
        %v1951 = vpack.c.b16 %v1920, %v1919
        %v1952 = vpack.c.b16 %v1922, %v1921
        %v1953 = vpack.c.b16 %v1924, %v1923
        %v1954 = vpack.c.b16 %v1926, %v1925
        %v1955 = vpack.c.b16 %v1928, %v1927
        %v1956 = vpack.c.b16 %v1930, %v1929
        %v1957 = vpack.c.b16 %v1932, %v1931
        %v1958 = vpack.c.b16 %v1934, %v1933
        %1983 = vmatprep.subr.bf16.mxu0 0
        %1984 = vmatpush1.bf16.msra.mxu0 %v1935
        %1985 = vmatprep.subr.bf16.mxu0 0
        %1986 = vmatpush1.bf16.msra.mxu0 %v1936
        %1987 = vmatprep.subr.bf16.mxu0 0
        %1988 = vmatpush1.bf16.msra.mxu0 %v1937
        %1989 = vmatprep.subr.bf16.mxu0 0
        %1990 = vmatpush1.bf16.msra.mxu0 %v1938
        %1991 = vmatprep.subr.bf16.mxu0 0
        %1992 = vmatpush1.bf16.msra.mxu0 %v1939
        %1993 = vmatprep.subr.bf16.mxu0 0
        %1994 = vmatpush1.bf16.msra.mxu0 %v1940
        %1995 = vmatprep.subr.bf16.mxu0 0
        %1996 = vmatpush1.bf16.msra.mxu0 %v1941
        %1997 = vmatprep.subr.bf16.mxu0 0
        %1998 = vmatpush1.bf16.msra.mxu0 %v1942
        %1999 = vmatprep.subr.bf16.mxu0 0
        %2000 = vmatpush1.bf16.msra.mxu0 %v1943
        %2001 = vmatprep.subr.bf16.mxu0 0
        %2002 = vmatpush1.bf16.msra.mxu0 %v1944
        %2003 = vmatprep.subr.bf16.mxu0 0
        %2004 = vmatpush1.bf16.msra.mxu0 %v1945
        %2005 = vmatprep.subr.bf16.mxu0 0
        %2006 = vmatpush1.bf16.msra.mxu0 %v1946
        %2007 = vmatprep.subr.bf16.mxu0 0
        %2008 = vmatpush1.bf16.msra.mxu0 %v1947
        %2009 = vmatprep.subr.bf16.mxu0 0
        %2010 = vmatpush1.bf16.msra.mxu0 %v1948
        %2011 = vmatprep.subr.bf16.mxu0 0
        %2012 = vmatpush1.bf16.msra.mxu0 %v1949
        %2013 = vmatprep.subr.bf16.mxu0 0
        %2014 = vmatpush1.bf16.msra.mxu0 %v1950
        %2015 = vmatprep.mubr.bf16.mxu0 %v1782
        %2016 = vmatmul.mubr.bf16.gmra.mrb[0].mxu0 %v1781
        %v2017 = vpop.f32.mrb[0].mxu0
        %v2018 = vadd.f32 %v1837, %v2017
        %v2019 = vpop.f32.mrb[0].mxu0
        %v2020 = vpop.f32.mrb[0].mxu0
        %v2021 = vpop.f32.mrb[0].mxu0
        %2022 = vdwg.mxu0
        %2023 = vmatprep.subr.bf16.mxu0 0
        %2024 = vmatpush1.bf16.msra.mxu0 %v1951
        %2025 = vmatprep.subr.bf16.mxu0 0
        %2026 = vmatpush1.bf16.msra.mxu0 %v1952
        %2027 = vmatprep.subr.bf16.mxu0 0
        %2028 = vmatpush1.bf16.msra.mxu0 %v1953
        %2029 = vmatprep.subr.bf16.mxu0 0
        %2030 = vmatpush1.bf16.msra.mxu0 %v1954
        %2031 = vmatprep.subr.bf16.mxu0 0
        %2032 = vmatpush1.bf16.msra.mxu0 %v1955
        %2033 = vmatprep.subr.bf16.mxu0 0
        %2034 = vmatpush1.bf16.msra.mxu0 %v1956
        %2035 = vmatprep.subr.bf16.mxu0 0
        %2036 = vmatpush1.bf16.msra.mxu0 %v1957
        %2037 = vmatprep.subr.bf16.mxu0 0
        %2038 = vmatpush1.bf16.msra.mxu0 %v1958
        %2039 = vmatprep.subr.bf16.mxu0 0
        %2040 = vmatpush1.bf16.msra.mxu0 0
        %2041 = vmatprep.subr.bf16.mxu0 0
        %2042 = vmatpush1.bf16.msra.mxu0 0
        %2043 = vmatprep.subr.bf16.mxu0 0
        %2044 = vmatpush1.bf16.msra.mxu0 0
        %2045 = vmatprep.subr.bf16.mxu0 0
        %2046 = vmatpush1.bf16.msra.mxu0 0
        %2047 = vmatprep.subr.bf16.mxu0 0
        %2048 = vmatpush1.bf16.msra.mxu0 0
        %2049 = vmatprep.subr.bf16.mxu0 0
        %2050 = vmatpush1.bf16.msra.mxu0 0
        %2051 = vmatprep.subr.bf16.mxu0 0
        %2052 = vmatpush1.bf16.msra.mxu0 0
        %2053 = vmatprep.subr.bf16.mxu0 0
        %2054 = vmatpush1.bf16.msra.mxu0 0
        %2055 = vmatprep.mubr.bf16.mxu0 0
        %2056 = vmatmul.mubr.bf16.gmra.mrb[0].mxu0 %v1783
        %v2057 = vpop.f32.mrb[0].mxu0
        %v2058 = vadd.f32 %v2018, %v2057
        %v2059 = vpop.f32.mrb[0].mxu0
        %v2060 = vpop.f32.mrb[0].mxu0
        %v2061 = vpop.f32.mrb[0].mxu0
        %2062 = vdwg.mxu0
        %vm2063 = vcmp.ge.f32.partialorder %v2058, 0.0
        %v2064 = vmul.f32 %v2058, 0.01
        %v2065 = vsel %vm2063, %v2058, %v2064
        %v2066 = vpack.c.bf16 %v2065, %v2065
        %v2067 = vld [vmem:[#allocation14] sm:$0xf]
        %v2068 = vld [vmem:[#allocation14 + $0x4] sm:$0xf]
        %v2069 = vld [vmem:[#allocation14 + $0x8] sm:$0xf]
        %v2070 = vld [vmem:[#allocation14 + $0xc] sm:$0xf]
        %v2071 = vld [vmem:[#allocation14 + $0x10] sm:$0xf]
        %v2072 = vld [vmem:[#allocation14 + $0x14] sm:$0xf]
        %v2073 = vld [vmem:[#allocation14 + $0x18] sm:$0xf]
        %v2074 = vld [vmem:[#allocation14 + $0x1c] sm:$0xf]
        %v2075 = vld [vmem:[#allocation14 + $0x20] sm:$0xf]
        %v2076 = vld [vmem:[#allocation14 + $0x24] sm:$0xf]
        %v2077 = vld [vmem:[#allocation14 + $0x28] sm:$0xf]
        %v2078 = vld [vmem:[#allocation14 + $0x2c] sm:$0xf]
        %v2079 = vld [vmem:[#allocation14 + $0x30] sm:$0xf]
        %v2080 = vld [vmem:[#allocation14 + $0x34] sm:$0xf]
        %v2081 = vld [vmem:[#allocation14 + $0x38] sm:$0xf]
        %v2082 = vld [vmem:[#allocation14 + $0x3c] sm:$0xf]
        %v2083 = vld [vmem:[%s16] sm:$0x1]
        %v2085 = vlaneseq
        %v2086 = vshrl.u32 %v2085, 7
        %v2087 = vsub.s32 0, %v2086
        %v2088 = vrot.slane %v2083, %v2087
        %v2106 = vunpack.c.l.b16 %v2067
        %v2107 = vunpack.c.l.b16 %v2068
        %v2108 = vunpack.c.l.b16 %v2069
        %v2109 = vunpack.c.l.b16 %v2070
        %v2110 = vunpack.c.l.b16 %v2071
        %v2111 = vunpack.c.l.b16 %v2072
        %v2112 = vunpack.c.l.b16 %v2073
        %v2113 = vunpack.c.l.b16 %v2074
        %v2114 = vunpack.c.l.b16 %v2075
        %v2115 = vunpack.c.l.b16 %v2076
        %v2116 = vunpack.c.l.b16 %v2077
        %v2117 = vunpack.c.l.b16 %v2078
        %v2118 = vunpack.c.l.b16 %v2079
        %v2119 = vunpack.c.l.b16 %v2080
        %v2120 = vunpack.c.l.b16 %v2081
        %v2121 = vunpack.c.l.b16 %v2082
        %v2122 = vpack.c.b16 %v2107, %v2106
        %v2123 = vpack.c.b16 %v2109, %v2108
        %v2124 = vpack.c.b16 %v2111, %v2110
        %v2125 = vpack.c.b16 %v2113, %v2112
        %v2126 = vpack.c.b16 %v2115, %v2114
        %v2127 = vpack.c.b16 %v2117, %v2116
        %v2128 = vpack.c.b16 %v2119, %v2118
        %v2129 = vpack.c.b16 %v2121, %v2120
        %2138 = vmatprep.subr.bf16.mxu0 0
        %2139 = vmatpush1.bf16.msra.mxu0 %v2122
        %2140 = vmatprep.subr.bf16.mxu0 0
        %2141 = vmatpush1.bf16.msra.mxu0 %v2123
        %2142 = vmatprep.subr.bf16.mxu0 0
        %2143 = vmatpush1.bf16.msra.mxu0 %v2124
        %2144 = vmatprep.subr.bf16.mxu0 0
        %2145 = vmatpush1.bf16.msra.mxu0 %v2125
        %2146 = vmatprep.subr.bf16.mxu0 0
        %2147 = vmatpush1.bf16.msra.mxu0 %v2126
        %2148 = vmatprep.subr.bf16.mxu0 0
        %2149 = vmatpush1.bf16.msra.mxu0 %v2127
        %2150 = vmatprep.subr.bf16.mxu0 0
        %2151 = vmatpush1.bf16.msra.mxu0 %v2128
        %2152 = vmatprep.subr.bf16.mxu0 0
        %2153 = vmatpush1.bf16.msra.mxu0 %v2129
        %2154 = vmatprep.subr.bf16.mxu0 0
        %2155 = vmatpush1.bf16.msra.mxu0 0
        %2156 = vmatprep.subr.bf16.mxu0 0
        %2157 = vmatpush1.bf16.msra.mxu0 0
        %2158 = vmatprep.subr.bf16.mxu0 0
        %2159 = vmatpush1.bf16.msra.mxu0 0
        %2160 = vmatprep.subr.bf16.mxu0 0
        %2161 = vmatpush1.bf16.msra.mxu0 0
        %2162 = vmatprep.subr.bf16.mxu0 0
        %2163 = vmatpush1.bf16.msra.mxu0 0
        %2164 = vmatprep.subr.bf16.mxu0 0
        %2165 = vmatpush1.bf16.msra.mxu0 0
        %2166 = vmatprep.subr.bf16.mxu0 0
        %2167 = vmatpush1.bf16.msra.mxu0 0
        %2168 = vmatprep.subr.bf16.mxu0 0
        %2169 = vmatpush1.bf16.msra.mxu0 0
        %2170 = vmatprep.mubr.bf16.mxu0 0
        %2171 = vmatmul.mubr.bf16.gmra.mrb[0].mxu0 %v2066
        %v2172 = vpop.f32.mrb[0].mxu0
        %v2173 = vadd.f32 %v2088, %v2172
        %v2174 = vpop.f32.mrb[0].mxu0
        %v2175 = vpop.f32.mrb[0].mxu0
        %v2176 = vpop.f32.mrb[0].mxu0
        %2177 = vdwg.mxu0
        %v2178 = vadd.f32 %v2173, %v1650
        %vm2179 = vcmp.ge.f32.partialorder %v2178, 0.0
        %v2180 = vmul.f32 %v2178, 0.01
        %v2181 = vsel %vm2179, %v2178, %v2180
        %v2182 = vrot.slane %v2181, 4
        %v2183 = vadd.f32 %v2181, %v2182
        %v2184 = vrot.slane %v2183, 2
        %v2185 = vadd.f32 %v2183, %v2184
        %v2186 = vrot.slane %v2185, 1
        %v2187 = vadd.f32 %v2185, %v2186
        %v2188 = vmul.f32 %v2187, 0.125
        %v2189 = vld [vmem:[%s19] sm:$0xff]
        %v2190 = vld [vmem:[%s19 + $0x8] sm:$0xff]
        %v2191 = vld [vmem:[%s19 + $0x10] sm:$0xff]
        %v2192 = vld [vmem:[%s19 + $0x18] sm:$0xff]
        %v2193 = vld [vmem:[%s19 + $0x20] sm:$0xff]
        %v2194 = vld [vmem:[%s19 + $0x28] sm:$0xff]
        %v2195 = vld [vmem:[%s19 + $0x30] sm:$0xff]
        %v2196 = vld [vmem:[%s19 + $0x38] sm:$0xff]
        %v2197 = vld [vmem:[%s19 + $0x40] sm:$0xff]
        %v2198 = vld [vmem:[%s19 + $0x48] sm:$0xff]
        %v2199 = vld [vmem:[%s19 + $0x50] sm:$0xff]
        %v2200 = vld [vmem:[%s19 + $0x58] sm:$0xff]
        %v2201 = vld [vmem:[%s19 + $0x60] sm:$0xff]
        %v2202 = vld [vmem:[%s19 + $0x68] sm:$0xff]
        %v2203 = vld [vmem:[%s19 + $0x70] sm:$0xff]
        %v2204 = vld [vmem:[%s19 + $0x78] sm:$0xff]
        %v2205 = vld [vmem:[%s20] sm:$0x1]
        %2206 = vmatprep.subr.mxu0 0.0
        %2207 = vmatpush1.msra.mxu0 %v2189
        %2208 = vmatprep.subr.mxu0 0.0
        %2209 = vmatpush1.msra.mxu0 %v2190
        %2210 = vmatprep.subr.mxu0 0.0
        %2211 = vmatpush1.msra.mxu0 %v2191
        %2212 = vmatprep.subr.mxu0 0.0
        %2213 = vmatpush1.msra.mxu0 %v2192
        %2214 = vmatprep.subr.mxu0 0.0
        %2215 = vmatpush1.msra.mxu0 %v2193
        %2216 = vmatprep.subr.mxu0 0.0
        %2217 = vmatpush1.msra.mxu0 %v2194
        %2218 = vmatprep.subr.mxu0 0.0
        %2219 = vmatpush1.msra.mxu0 %v2195
        %2220 = vmatprep.subr.mxu0 0.0
        %2221 = vmatpush1.msra.mxu0 %v2196
        %2222 = vmatprep.subr.mxu0 0.0
        %2223 = vmatpush1.msra.mxu0 %v2197
        %2224 = vmatprep.subr.mxu0 0.0
        %2225 = vmatpush1.msra.mxu0 %v2198
        %2226 = vmatprep.subr.mxu0 0.0
        %2227 = vmatpush1.msra.mxu0 %v2199
        %2228 = vmatprep.subr.mxu0 0.0
        %2229 = vmatpush1.msra.mxu0 %v2200
        %2230 = vmatprep.subr.mxu0 0.0
        %2231 = vmatpush1.msra.mxu0 %v2201
        %2232 = vmatprep.subr.mxu0 0.0
        %2233 = vmatpush1.msra.mxu0 %v2202
        %2234 = vmatprep.subr.mxu0 0.0
        %2235 = vmatpush1.msra.mxu0 %v2203
        %2236 = vmatprep.subr.mxu0 0.0
        %2237 = vmatpush1.msra.mxu0 %v2204
        %2238 = vmatprep.subr.mxu0 0.0
        %2239 = vmatpush1.msra.mxu0 0.0
        %2240 = vmatprep.subr.mxu0 0.0
        %2241 = vmatpush1.msra.mxu0 0.0
        %2242 = vmatprep.subr.mxu0 0.0
        %2243 = vmatpush1.msra.mxu0 0.0
        %2244 = vmatprep.subr.mxu0 0.0
        %2245 = vmatpush1.msra.mxu0 0.0
        %2246 = vmatprep.subr.mxu0 0.0
        %2247 = vmatpush1.msra.mxu0 0.0
        %2248 = vmatprep.subr.mxu0 0.0
        %2249 = vmatpush1.msra.mxu0 0.0
        %2250 = vmatprep.subr.mxu0 0.0
        %2251 = vmatpush1.msra.mxu0 0.0
        %2252 = vmatprep.subr.mxu0 0.0
        %2253 = vmatpush1.msra.mxu0 0.0
        %2254 = vmatprep.subr.mxu0 0.0
        %2255 = vmatpush1.msra.mxu0 0.0
        %2256 = vmatprep.subr.mxu0 0.0
        %2257 = vmatpush1.msra.mxu0 0.0
        %2258 = vmatprep.subr.mxu0 0.0
        %2259 = vmatpush1.msra.mxu0 0.0
        %2260 = vmatprep.subr.mxu0 0.0
        %2261 = vmatpush1.msra.mxu0 0.0
        %2262 = vmatprep.subr.mxu0 0.0
        %2263 = vmatpush1.msra.mxu0 0.0
        %2264 = vmatprep.subr.mxu0 0.0
        %2265 = vmatpush1.msra.mxu0 0.0
        %2266 = vmatprep.subr.mxu0 0.0
        %2267 = vmatpush1.msra.mxu0 0.0
        %2268 = vmatprep.subr.mxu0 0.0
        %2269 = vmatpush1.msra.mxu0 0.0
        %2270 = vmatprep.mubr.f32.mxu0 0.0
        %2271 = vmatmul.mubr.f32.gmra.mrb[0].mxu0 %v2188
        %v2272 = vpop.f32.mrb[0].mxu0
        %v2273 = vadd.f32 %v2205, %v2272
        %v2274 = vpop.f32.mrb[0].mxu0
        %2275 = vdwg.mxu0
        %vm2276 = vcmask 1040384
        %v2277 = vsel %vm2276, %v2273, -inf
        %2278 = vmax.xlane.f32.xlu0 %v2277
        %v2279 = vpop.xlane.xlu0 %2278
        %v2280 = vsub.f32 %v2273, %v2279
        %v2281 = vmul.f32 %v2280, 1.442695
        %v2282 = vpow.pop %v2281
        %v2283 = vsel %vm2276, %v2282, 0.0
        %2284 = vadd.xlane.f32.xlu0 %v2283
        %v2285 = vpop.xlane.xlu0 %2284
        %v2286 = vlog2.pop %v2285
        %v2287 = vmul.f32 %v2286, 0.6931472
        %v2288 = vadd.f32 %v2287, %v2279
        %v2289 = vsub.f32 %v2273, %v2288
        %v2290 = vlaneseq
        %v2291 = vshrl.u32 %v2290, 7
        %v2292 = vsub.s32 0, %v2291
        %v2293 = vrot.slane %v2289, %v2292
        %2294 = vst [vmem:[%s766] sm:$0xff] %v2293
        %s2295 = sand.u32 %s494, 1
        %s2296 = scalar_lea.sflag [#allocation5], %s2295
        %s2297 = sand.u32 %s494, 1
        %s2298 = smul.addr %s2297, 8
        %s2299 = scalar_lea.vmem [#allocation17], %s2298
        // Predicated region
        $region137: #{tpu_custom_call.1} parent=103 // pred_check
          %p2300 = pneg %p504
        $region138: #{tpu_custom_call.1} parent=103 // pred_check_branch
          %2302 = sbr.rel (%p2300) target = $region140
        $region139: #{tpu_custom_call.1} parent=103 // pred_region
          %s2304 = ssub.s32 128, 128
          %2305 = vsyncadd %s2296, %s2304
          %s2306 = smul.addr %s40, 128
          %s2307 = scalar_lea.hbm %s21, %s2306
          %s2309 = sshll.u32 %s2299, 4
          %s2310 = int_to_ptr.vmem [resolvable:$true] %s2309
          %2312 = dma.vmem_to_hbm [thread:$0]  %s2310, 128, %s2307, %s2296
        $region140: #{tpu_custom_call.1} parent=103 // pred_fallthru
          _
      $region104: #{tpu_custom_call.1} parent=5 // pred_fallthru
        _
      %p2313 = scmp.le.s32.totalorder 2, %s35
      // Predicated region
      $region141: #{tpu_custom_call.1} parent=5 // pred_check
        %p2314 = pneg %p2313
      $region142: #{tpu_custom_call.1} parent=5 // pred_check_branch
        %2316 = sbr.rel (%p2314) target = $region144
      $region143: #{tpu_custom_call.1} parent=5 // pred_region
        %s2317 = ssub.s32 %s35, 2
        // Predicated region
        $region145: #{tpu_custom_call.1} parent=143 // pred_check
          %p2318 = pneg %p510
        $region146: #{tpu_custom_call.1} parent=143 // pred_check_branch
          %2320 = sbr.rel (%p2318) target = $region148
        $region147: #{tpu_custom_call.1} parent=143 // pred_region
          %s2321 = sand.u32 %s495, 1
          %s2322 = scalar_lea.sflag [#allocation5], %s2321
          %s2323 = sand.u32 %s495, 1
          %s2324 = smul.addr %s2323, 8
          %s2325 = scalar_lea.vmem [#allocation17], %s2324
          %2326 = dma.done %s2322, 128
        $region148: #{tpu_custom_call.1} parent=143 // pred_fallthru
          _
      $region144: #{tpu_custom_call.1} parent=5 // pred_fallthru
        _
    $region6: #{tpu_custom_call.1} parent=1 // loop_footer
      %s39 = sadd.s32 1, %s35
    $region7: #{tpu_custom_call.1} parent=1 // loop_footer_branch
      %34 = sbr.rel target = $region3
    $region8: #{tpu_custom_call.1} parent=1 // loop_exit
      _
    %2327 = vsyncpa [#allocation4], 1
    %s2328 = scalar_lea.sflag [#allocation4], 1
    %2329 = vsyncpa %s2328, 1
    %2330 = vsyncpa [#allocation7], 1
    %2331 = vsyncpa [#allocation10], 1
    %2332 = vsyncpa [#allocation13], 1
    %2333 = vsyncpa [#allocation16], 1
    %2334 = vsyncpa [#allocation5], 1
    %s2335 = scalar_lea.sflag [#allocation5], 1
    %2336 = vsyncpa %s2335, 1

</llo_original>
